<compile_context>
chip_gen: v5e
topology: v5e:2x2
jax: 0.10.0
libtpu: 0.0.40
codegen_flags: <defaults>
</compile_context>

<pallas_src>
import functools

import jax
import jax.numpy as jnp
from jax import lax
from jax.experimental import pallas as pl
from jax.experimental.pallas import tpu as pltpu


def _bottleneck_kernel(xb_ref,
                       w1_ref, s1_ref, b1_ref,
                       w2_ref, s2_ref, b2_ref,
                       w3_ref, s3_ref, b3_ref,
                       o_ref, *, W, mm_dtype):
    # Block shapes:
    #   xb_ref : (1, 1, C, Pg)  f32, Pg = (tile_h + 4) * W  (2 dummy + 1 halo
    #            row above, 1 halo + 1 dummy row below the tile's rows)
    #   o_ref  : (1, Cout, L)   f32, L = tile_h * W  (lane-dense output slab)
    Cout, L = o_ref.shape[1], o_ref.shape[2]
    Pg = xb_ref.shape[3]
    width = w1_ref.shape[0]
    TH = L // W

    xh = xb_ref[0, 0]                                           # (C, Pg) f32

    # ---- conv1 (1x1) + bn1 + relu over the whole row band -------------------
    z1 = jnp.dot(w1_ref[...], xh.astype(mm_dtype),
                 preferred_element_type=jnp.float32)            # (width, Pg)
    h1 = jnp.maximum(z1 * s1_ref[...] + b1_ref[...], 0.0)

    # Zero conv2's row halo where it falls on image padding (top row of the
    # first band, bottom row of the last band).  Pure in-kernel iota compares
    # against program_id-derived scalar thresholds - no mask input, no div/mod.
    t = pl.program_id(1)
    t_last = pl.num_programs(1) - 1
    ip = lax.broadcasted_iota(jnp.int32, (1, Pg), 1)
    top_lo = jnp.where(t == 0, W, Pg)
    top_hi = jnp.where(t == 0, 2 * W, Pg)
    bot_lo = jnp.where(t == t_last, (TH + 2) * W, Pg)
    bot_hi = jnp.where(t == t_last, (TH + 3) * W, Pg)
    bad = ((ip >= top_lo) & (ip < top_hi)) | ((ip >= bot_lo) & (ip < bot_hi))
    h1 = jnp.where(bad, 0.0, h1)                                # (width, Pg) f32

    # Column-edge validity masks for the dx = 0 / dx = 2 taps (SAME padding).
    # col = p mod W via an exact f32 floor trick (no integer div/mod on VPU).
    ipo = lax.broadcasted_iota(jnp.int32, (1, L), 1).astype(jnp.float32)
    rowf = jnp.floor((ipo + 0.5) * (1.0 / W))
    colf = ipo - rowf * W
    not_left = (colf > 0.5).astype(jnp.float32)                 # 0 at x == 0
    not_right = (colf < W - 1.5).astype(jnp.float32)            # 0 at x == W-1

    # ---- conv2 (3x3, stride=1, pad=1) ---------------------------------------
    # Output pixel p = y*W + x needs h1 at lane p + (dy+1)*W + dx - 1; all
    # offsets are non-negative static lane-offset slices thanks to the dummy
    # rows.  Accumulate the 9 taps in a vreg-resident f32 value (no scratch).
    # TODO(synk): at real widths, concatenate taps along K (3*width / 9*width)
    #             for better MXU occupancy.
    acc = jnp.zeros((width, L), jnp.float32)
    for dy in range(3):
        for dx in range(3):
            s = (dy + 1) * W + dx - 1
            tap = h1[:, s:s + L]                                # (width, L) f32
            if dx == 0:
                tap = tap * not_left
            elif dx == 2:
                tap = tap * not_right
            acc = acc + jnp.dot(w2_ref[dy, dx], tap.astype(mm_dtype),
                                preferred_element_type=jnp.float32)
    h2 = jnp.maximum(acc * s2_ref[...] + b2_ref[...], 0.0)      # (width, L) f32

    # ---- conv3 (1x1) + bn3 ---------------------------------------------------
    h3 = jnp.dot(w3_ref[...], h2.astype(mm_dtype),
                 preferred_element_type=jnp.float32)            # (Cout, L)
    h3 = h3 * s3_ref[...] + b3_ref[...]

    # ---- residual add (f32, interior lanes of the same band) + relu ---------
    identity = xh[:, 2 * W:2 * W + L]                           # (Cout, L) f32
    o_ref[0] = jnp.maximum(h3 + identity, 0.0).astype(o_ref.dtype)


def _pick_tile_h(H, W, C, Cout, budget_bytes):
    """Largest row band (divisor of H) whose double-buffered blocks fit."""
    divisors = [d for d in range(H, 0, -1) if H % d == 0]

    def fits(d):
        in_b = 2 * C * (d + 4) * W * 4          # double-buffered input band
        out_b = 2 * Cout * d * W * 4            # double-buffered output band
        return in_b + out_b <= budget_bytes

    for d in divisors:
        ok_shape = (H // d == 1) or ((d * W) % 128 == 0)  # lane-dense out slab
        if ok_shape and fits(d):
            return d
    for d in divisors:
        if (H // d == 1) or ((d * W) % 128 == 0):
            return d
    return H


def bottleneck_forward(x_nchw, params, *, tile_h=None,
                       matmul_dtype=jnp.bfloat16,
                       vmem_step_budget=12 * 1024 * 1024):
    """Bottleneck forward.  x_nchw: (N, C, H, W) f32 -> (N, C, H, W) f32."""
    w1, s1, b1, w2, s2, b2, w3, s3, b3 = params
    N, C, H, W = x_nchw.shape
    width = w1.shape[1]
    Cout = w3.shape[1]
    assert C == Cout, "identity residual requires inplanes == planes * 4"

    if tile_h is None:
        tile_h = _pick_tile_h(H, W, C, Cout, vmem_step_budget)
    assert H % tile_h == 0
    T = H // tile_h
    assert T == 1 or (tile_h * W) % 128 == 0
    THg = tile_h + 4                      # 2 dummy + 1 halo rows top, 1+1 bottom
    Pg = THg * W
    L = tile_h * W

    # NCHW consumed natively: only a small zero row-pad, no transposes.
    xpad = jnp.pad(x_nchw.astype(jnp.float32), ((0, 0), (0, 0), (2, 2), (0, 0)))
    if T == 1:
        xb = xpad.reshape(N, 1, C, Pg)                       # no duplication
    else:
        xb = jnp.stack(
            [xpad[:, :, t * tile_h:t * tile_h + THg, :] for t in range(T)],
            axis=1).reshape(N, T, C, Pg)

    mm = matmul_dtype
    w1t = jnp.transpose(w1).astype(mm)                       # (width, C)
    w2t = jnp.transpose(w2, (0, 1, 3, 2)).astype(mm)         # (3, 3, out, in)
    w3t = jnp.transpose(w3).astype(mm)                       # (Cout, width)
    s1c, b1c = s1.reshape(width, 1), b1.reshape(width, 1)
    s2c, b2c = s2.reshape(width, 1), b2.reshape(width, 1)
    s3c, b3c = s3.reshape(Cout, 1), b3.reshape(Cout, 1)

    kernel = functools.partial(_bottleneck_kernel, W=W, mm_dtype=mm)

    out_flat = pl.pallas_call(
        kernel,
        out_shape=jax.ShapeDtypeStruct((N, Cout, H * W), jnp.float32),
        grid_spec=pltpu.PrefetchScalarGridSpec(
            num_scalar_prefetch=0,
            grid=(N, T),
            in_specs=[
                pl.BlockSpec((1, 1, C, Pg), lambda n, t: (n, t, 0, 0)),
                pl.BlockSpec((width, C), lambda n, t: (0, 0)),
                pl.BlockSpec((width, 1), lambda n, t: (0, 0)),
                pl.BlockSpec((width, 1), lambda n, t: (0, 0)),
                pl.BlockSpec((3, 3, width, width), lambda n, t: (0, 0, 0, 0)),
                pl.BlockSpec((width, 1), lambda n, t: (0, 0)),
                pl.BlockSpec((width, 1), lambda n, t: (0, 0)),
                pl.BlockSpec((Cout, width), lambda n, t: (0, 0)),
                pl.BlockSpec((Cout, 1), lambda n, t: (0, 0)),
                pl.BlockSpec((Cout, 1), lambda n, t: (0, 0)),
            ],
            out_specs=pl.BlockSpec((1, Cout, L), lambda n, t: (n, 0, t)),
        ),
        compiler_params=pltpu.CompilerParams(
            dimension_semantics=("parallel", "parallel"),
            vmem_limit_bytes=32 * 1024 * 1024,
        ),
    )(xb, w1t, s1c, b1c, w2t, s2c, b2c, w3t, s3c, b3c)

    return out_flat.reshape(N, Cout, H, W)                   # NCHW, no transpose


def make_params(key, inplanes, planes):
    """Deterministic synthetic parameters (shapes match Bottleneck.__init__)."""
    expansion = 4
    width = planes                      # base_width=64, groups=1 -> width=planes
    cout = planes * expansion
    eps = 1e-5
    ks = jax.random.split(key, 15)

    def bn_fold(kg, kb, km, kv, c):
        gamma = jax.random.uniform(kg, (c,), minval=0.5, maxval=1.5)
        beta = 0.1 * jax.random.normal(kb, (c,))
        mean = 0.1 * jax.random.normal(km, (c,))
        var = jax.random.uniform(kv, (c,), minval=0.5, maxval=1.5)
        scale = gamma / jnp.sqrt(var + eps)
        bias = beta - mean * scale
        return scale.astype(jnp.float32), bias.astype(jnp.float32)

    w1 = (0.2 * jax.random.normal(ks[0], (inplanes, width))).astype(jnp.float32)
    w2 = (0.2 * jax.random.normal(ks[1], (3, 3, width, width))).astype(jnp.float32)
    w3 = (0.2 * jax.random.normal(ks[2], (width, cout))).astype(jnp.float32)
    s1, b1 = bn_fold(ks[3], ks[4], ks[5], ks[6], width)
    s2, b2 = bn_fold(ks[7], ks[8], ks[9], ks[10], width)
    s3, b3 = bn_fold(ks[11], ks[12], ks[13], ks[14], cout)
    return (w1, s1, b1, w2, s2, b2, w3, s3, b3)


def reference_forward(x_nchw, params):
    """Pure-JAX reference (lax.conv) mirroring the PyTorch forward."""
    w1, s1, b1, w2, s2, b2, w3, s3, b3 = params
    x = jnp.transpose(x_nchw, (0, 2, 3, 1))
    dn = ('NHWC', 'HWIO', 'NHWC')
    prec = lax.Precision.HIGHEST
    h = lax.conv_general_dilated(x, w1.reshape(1, 1, *w1.shape), (1, 1), 'VALID',
                                 dimension_numbers=dn, precision=prec)
    h = jnp.maximum(h * s1 + b1, 0.0)
    h = lax.conv_general_dilated(h, w2, (1, 1), 'SAME',
                                 dimension_numbers=dn, precision=prec)
    h = jnp.maximum(h * s2 + b2, 0.0)
    h = lax.conv_general_dilated(h, w3.reshape(1, 1, *w3.shape), (1, 1), 'VALID',
                                 dimension_numbers=dn, precision=prec)
    h = h * s3 + b3
    out = jnp.maximum(h + x, 0.0)
    return jnp.transpose(out, (0, 3, 1, 2))


if __name__ == "__main__":
    # Bottleneck(inplanes=16, planes=4, stride=1, downsample=None)
    # -> width=4, output channels = planes*4 = 16 = inplanes (residual add OK)
    N, inplanes, H, W = 2, 16, 16, 16
    planes = 4

    key = jax.random.PRNGKey(0)
    kx, kp = jax.random.split(key)
    x = jax.random.normal(kx, (N, inplanes, H, W), dtype=jnp.float32)
    params = make_params(kp, inplanes, planes)

    ref = reference_forward(x, params)

    # f32 matmul path: tight numerical check against the lax.conv reference.
    out_f32 = jax.block_until_ready(
        bottleneck_forward(x, params, matmul_dtype=jnp.float32))
    assert out_f32.shape == (N, planes * 4, H, W), out_f32.shape
    assert jnp.allclose(out_f32, ref, atol=1e-4, rtol=1e-4), (
        float(jnp.max(jnp.abs(out_f32 - ref))))

    # bf16 matmul path (default): only matmul operands are bf16, identity and
    # epilogues stay f32 -> tighter than before, checked with a loose bound.
    out_bf16 = jax.block_until_ready(
        bottleneck_forward(x, params, matmul_dtype=jnp.bfloat16))
    assert out_bf16.shape == (N, planes * 4, H, W), out_bf16.shape
    assert jnp.allclose(out_bf16, ref, atol=1e-1, rtol=1e-1), (
        float(jnp.max(jnp.abs(out_bf16 - ref))))

    print("KERNEL_OK")
</pallas_src>

<mosaic_0001>
module attributes {stable_mosaic.version = 11 : i64} {
  func.func @_bottleneck_kernel(%arg0: i32, %arg1: i32, %arg2: memref<1x1x16x320xf32, #tpu.memory_space<vmem>>, %arg3: memref<4x16xf32, #tpu.memory_space<vmem>>, %arg4: memref<4x1xf32, #tpu.memory_space<vmem>>, %arg5: memref<4x1xf32, #tpu.memory_space<vmem>>, %arg6: memref<3x3x4x4xf32, #tpu.memory_space<vmem>>, %arg7: memref<4x1xf32, #tpu.memory_space<vmem>>, %arg8: memref<4x1xf32, #tpu.memory_space<vmem>>, %arg9: memref<16x4xf32, #tpu.memory_space<vmem>>, %arg10: memref<16x1xf32, #tpu.memory_space<vmem>>, %arg11: memref<16x1xf32, #tpu.memory_space<vmem>>, %arg12: memref<1x16x256xf32, #tpu.memory_space<vmem>>) attributes {dimension_semantics = [#tpu.dimension_semantics<parallel>, #tpu.dimension_semantics<parallel>], iteration_bounds = array<i64: 2, 1>, scalar_prefetch = 0 : i64, scratch_operands = 0 : i64, tpu.core_type = #tpu.core_type<tc>, window_params = [{transform_indices = @transform_0, window_bounds = array<i64: 1, 1, 16, 320>}, {pipeline_mode = #tpu.pipeline_mode<synchronous>, transform_indices = @transform_1, window_bounds = array<i64: 4, 16>}, {pipeline_mode = #tpu.pipeline_mode<synchronous>, transform_indices = @transform_2, window_bounds = array<i64: 4, 1>}, {pipeline_mode = #tpu.pipeline_mode<synchronous>, transform_indices = @transform_3, window_bounds = array<i64: 4, 1>}, {pipeline_mode = #tpu.pipeline_mode<synchronous>, transform_indices = @transform_4, window_bounds = array<i64: 3, 3, 4, 4>}, {pipeline_mode = #tpu.pipeline_mode<synchronous>, transform_indices = @transform_5, window_bounds = array<i64: 4, 1>}, {pipeline_mode = #tpu.pipeline_mode<synchronous>, transform_indices = @transform_6, window_bounds = array<i64: 4, 1>}, {pipeline_mode = #tpu.pipeline_mode<synchronous>, transform_indices = @transform_7, window_bounds = array<i64: 16, 4>}, {pipeline_mode = #tpu.pipeline_mode<synchronous>, transform_indices = @transform_8, window_bounds = array<i64: 16, 1>}, {pipeline_mode = #tpu.pipeline_mode<synchronous>, transform_indices = @transform_9, window_bounds = array<i64: 16, 1>}, {transform_indices = @transform_10, window_bounds = array<i64: 1, 16, 256>}]} {
    %c0 = arith.constant 0 : index
    %c0_0 = arith.constant 0 : index
    %c0_1 = arith.constant 0 : index
    %c0_2 = arith.constant 0 : index
    %0 = vector.load %arg2[%c0, %c0_0, %c0_1, %c0_2] : memref<1x1x16x320xf32, #tpu.memory_space<vmem>>, vector<1x1x16x320xf32>
    %1 = vector.shape_cast %0 : vector<1x1x16x320xf32> to vector<16x320xf32>
    %c0_3 = arith.constant 0 : index
    %c0_4 = arith.constant 0 : index
    %2 = vector.load %arg3[%c0_3, %c0_4] : memref<4x16xf32, #tpu.memory_space<vmem>>, vector<4x16xf32>
    %cst = arith.constant dense<0.000000e+00> : vector<4x320xf32>
    %3 = tpu.matmul %2, %1, %cst {dimension_numbers = #tpu.dot_dimension_numbers<[1], [0], [0], [1], [0, 0, 1, 1], [], []>} : vector<4x16xf32>, vector<16x320xf32>, vector<4x320xf32> -> vector<4x320xf32>
    %c0_5 = arith.constant 0 : index
    %c0_6 = arith.constant 0 : index
    %4 = vector.load %arg4[%c0_5, %c0_6] : memref<4x1xf32, #tpu.memory_space<vmem>>, vector<4x1xf32>
    %5 = vector.broadcast %4 : vector<4x1xf32> to vector<4x320xf32>
    %6 = arith.mulf %3, %5 : vector<4x320xf32>
    %c0_7 = arith.constant 0 : index
    %c0_8 = arith.constant 0 : index
    %7 = vector.load %arg5[%c0_7, %c0_8] : memref<4x1xf32, #tpu.memory_space<vmem>>, vector<4x1xf32>
    %8 = vector.broadcast %7 : vector<4x1xf32> to vector<4x320xf32>
    %9 = arith.addf %6, %8 : vector<4x320xf32>
    %cst_9 = arith.constant 0.000000e+00 : f32
    %10 = vector.broadcast %cst_9 : f32 to vector<4x320xf32>
    %11 = arith.maximumf %9, %10 : vector<4x320xf32>
    %12 = tpu.iota {dimensions = array<i32: 1>} : vector<1x320xi32>
    %c0_i32 = arith.constant 0 : i32
    %13 = arith.cmpi eq, %arg1, %c0_i32 : i32
    %c16_i32 = arith.constant 16 : i32
    %c320_i32 = arith.constant 320 : i32
    %14 = arith.select %13, %c16_i32, %c320_i32 : i32
    %c0_i32_10 = arith.constant 0 : i32
    %15 = arith.cmpi eq, %arg1, %c0_i32_10 : i32
    %c32_i32 = arith.constant 32 : i32
    %c320_i32_11 = arith.constant 320 : i32
    %16 = arith.select %15, %c32_i32, %c320_i32_11 : i32
    %c0_i32_12 = arith.constant 0 : i32
    %17 = arith.cmpi eq, %arg1, %c0_i32_12 : i32
    %c288_i32 = arith.constant 288 : i32
    %c320_i32_13 = arith.constant 320 : i32
    %18 = arith.select %17, %c288_i32, %c320_i32_13 : i32
    %c0_i32_14 = arith.constant 0 : i32
    %19 = arith.cmpi eq, %arg1, %c0_i32_14 : i32
    %c304_i32 = arith.constant 304 : i32
    %c320_i32_15 = arith.constant 320 : i32
    %20 = arith.select %19, %c304_i32, %c320_i32_15 : i32
    %21 = vector.broadcast %14 : i32 to vector<1x320xi32>
    %22 = arith.cmpi sge, %12, %21 : vector<1x320xi32>
    %23 = vector.broadcast %16 : i32 to vector<1x320xi32>
    %24 = arith.cmpi slt, %12, %23 : vector<1x320xi32>
    %25 = arith.andi %22, %24 : vector<1x320xi1>
    %26 = vector.broadcast %18 : i32 to vector<1x320xi32>
    %27 = arith.cmpi sge, %12, %26 : vector<1x320xi32>
    %28 = vector.broadcast %20 : i32 to vector<1x320xi32>
    %29 = arith.cmpi slt, %12, %28 : vector<1x320xi32>
    %30 = arith.andi %27, %29 : vector<1x320xi1>
    %31 = arith.ori %25, %30 : vector<1x320xi1>
    %cst_16 = arith.constant 0.000000e+00 : f32
    %32 = vector.shape_cast %31 : vector<1x320xi1> to vector<1x320xi1>
    %33 = vector.broadcast %32 : vector<1x320xi1> to vector<4x320xi1>
    %34 = vector.broadcast %cst_16 : f32 to vector<4x320xf32>
    %35 = arith.select %33, %34, %11 : vector<4x320xi1>, vector<4x320xf32>
    %36 = tpu.iota {dimensions = array<i32: 1>} : vector<1x256xi32>
    %37 = arith.sitofp %36 : vector<1x256xi32> to vector<1x256xf32>
    %cst_17 = arith.constant 5.000000e-01 : f32
    %38 = vector.broadcast %cst_17 : f32 to vector<1x256xf32>
    %39 = arith.addf %37, %38 : vector<1x256xf32>
    %cst_18 = arith.constant 6.250000e-02 : f32
    %40 = vector.broadcast %cst_18 : f32 to vector<1x256xf32>
    %41 = arith.mulf %39, %40 : vector<1x256xf32>
    %42 = math.floor %41 : vector<1x256xf32>
    %cst_19 = arith.constant 1.600000e+01 : f32
    %43 = vector.broadcast %cst_19 : f32 to vector<1x256xf32>
    %44 = arith.mulf %42, %43 : vector<1x256xf32>
    %45 = arith.subf %37, %44 : vector<1x256xf32>
    %cst_20 = arith.constant 5.000000e-01 : f32
    %46 = vector.broadcast %cst_20 : f32 to vector<1x256xf32>
    %47 = arith.cmpf ogt, %45, %46 : vector<1x256xf32>
    %48 = arith.extui %47 : vector<1x256xi1> to vector<1x256xi32>
    %49 = arith.sitofp %48 : vector<1x256xi32> to vector<1x256xf32>
    %cst_21 = arith.constant 1.450000e+01 : f32
    %50 = vector.broadcast %cst_21 : f32 to vector<1x256xf32>
    %51 = arith.cmpf olt, %45, %50 : vector<1x256xf32>
    %52 = arith.extui %51 : vector<1x256xi1> to vector<1x256xi32>
    %53 = arith.sitofp %52 : vector<1x256xi32> to vector<1x256xf32>
    %cst_22 = arith.constant 0.000000e+00 : f32
    %54 = vector.broadcast %cst_22 : f32 to vector<4x256xf32>
    %55 = vector.extract_strided_slice %35 {offsets = [0, 15], sizes = [4, 256], strides = [1, 1]} : vector<4x320xf32> to vector<4x256xf32>
    %56 = vector.broadcast %49 : vector<1x256xf32> to vector<4x256xf32>
    %57 = arith.mulf %55, %56 : vector<4x256xf32>
    %c0_23 = arith.constant 0 : index
    %c0_24 = arith.constant 0 : index
    %c0_25 = arith.constant 0 : index
    %c0_26 = arith.constant 0 : index
    %58 = vector.load %arg6[%c0_23, %c0_24, %c0_25, %c0_26] : memref<3x3x4x4xf32, #tpu.memory_space<vmem>>, vector<1x1x4x4xf32>
    %59 = vector.shape_cast %58 : vector<1x1x4x4xf32> to vector<4x4xf32>
    %cst_27 = arith.constant dense<0.000000e+00> : vector<4x256xf32>
    %60 = tpu.matmul %59, %57, %cst_27 {dimension_numbers = #tpu.dot_dimension_numbers<[1], [0], [0], [1], [0, 0, 1, 1], [], []>} : vector<4x4xf32>, vector<4x256xf32>, vector<4x256xf32> -> vector<4x256xf32>
    %61 = arith.addf %54, %60 : vector<4x256xf32>
    %62 = vector.extract_strided_slice %35 {offsets = [0, 16], sizes = [4, 256], strides = [1, 1]} : vector<4x320xf32> to vector<4x256xf32>
    %c0_28 = arith.constant 0 : index
    %c1 = arith.constant 1 : index
    %c0_29 = arith.constant 0 : index
    %c0_30 = arith.constant 0 : index
    %63 = vector.load %arg6[%c0_28, %c1, %c0_29, %c0_30] : memref<3x3x4x4xf32, #tpu.memory_space<vmem>>, vector<1x1x4x4xf32>
    %64 = vector.shape_cast %63 : vector<1x1x4x4xf32> to vector<4x4xf32>
    %cst_31 = arith.constant dense<0.000000e+00> : vector<4x256xf32>
    %65 = tpu.matmul %64, %62, %cst_31 {dimension_numbers = #tpu.dot_dimension_numbers<[1], [0], [0], [1], [0, 0, 1, 1], [], []>} : vector<4x4xf32>, vector<4x256xf32>, vector<4x256xf32> -> vector<4x256xf32>
    %66 = arith.addf %61, %65 : vector<4x256xf32>
    %67 = vector.extract_strided_slice %35 {offsets = [0, 17], sizes = [4, 256], strides = [1, 1]} : vector<4x320xf32> to vector<4x256xf32>
    %68 = vector.broadcast %53 : vector<1x256xf32> to vector<4x256xf32>
    %69 = arith.mulf %67, %68 : vector<4x256xf32>
    %c0_32 = arith.constant 0 : index
    %c2 = arith.constant 2 : index
    %c0_33 = arith.constant 0 : index
    %c0_34 = arith.constant 0 : index
    %70 = vector.load %arg6[%c0_32, %c2, %c0_33, %c0_34] : memref<3x3x4x4xf32, #tpu.memory_space<vmem>>, vector<1x1x4x4xf32>
    %71 = vector.shape_cast %70 : vector<1x1x4x4xf32> to vector<4x4xf32>
    %cst_35 = arith.constant dense<0.000000e+00> : vector<4x256xf32>
    %72 = tpu.matmul %71, %69, %cst_35 {dimension_numbers = #tpu.dot_dimension_numbers<[1], [0], [0], [1], [0, 0, 1, 1], [], []>} : vector<4x4xf32>, vector<4x256xf32>, vector<4x256xf32> -> vector<4x256xf32>
    %73 = arith.addf %66, %72 : vector<4x256xf32>
    %74 = vector.extract_strided_slice %35 {offsets = [0, 31], sizes = [4, 256], strides = [1, 1]} : vector<4x320xf32> to vector<4x256xf32>
    %75 = vector.broadcast %49 : vector<1x256xf32> to vector<4x256xf32>
    %76 = arith.mulf %74, %75 : vector<4x256xf32>
    %c1_36 = arith.constant 1 : index
    %c0_37 = arith.constant 0 : index
    %c0_38 = arith.constant 0 : index
    %c0_39 = arith.constant 0 : index
    %77 = vector.load %arg6[%c1_36, %c0_37, %c0_38, %c0_39] : memref<3x3x4x4xf32, #tpu.memory_space<vmem>>, vector<1x1x4x4xf32>
    %78 = vector.shape_cast %77 : vector<1x1x4x4xf32> to vector<4x4xf32>
    %cst_40 = arith.constant dense<0.000000e+00> : vector<4x256xf32>
    %79 = tpu.matmul %78, %76, %cst_40 {dimension_numbers = #tpu.dot_dimension_numbers<[1], [0], [0], [1], [0, 0, 1, 1], [], []>} : vector<4x4xf32>, vector<4x256xf32>, vector<4x256xf32> -> vector<4x256xf32>
    %80 = arith.addf %73, %79 : vector<4x256xf32>
    %81 = vector.extract_strided_slice %35 {offsets = [0, 32], sizes = [4, 256], strides = [1, 1]} : vector<4x320xf32> to vector<4x256xf32>
    %c1_41 = arith.constant 1 : index
    %c1_42 = arith.constant 1 : index
    %c0_43 = arith.constant 0 : index
    %c0_44 = arith.constant 0 : index
    %82 = vector.load %arg6[%c1_41, %c1_42, %c0_43, %c0_44] : memref<3x3x4x4xf32, #tpu.memory_space<vmem>>, vector<1x1x4x4xf32>
    %83 = vector.shape_cast %82 : vector<1x1x4x4xf32> to vector<4x4xf32>
    %cst_45 = arith.constant dense<0.000000e+00> : vector<4x256xf32>
    %84 = tpu.matmul %83, %81, %cst_45 {dimension_numbers = #tpu.dot_dimension_numbers<[1], [0], [0], [1], [0, 0, 1, 1], [], []>} : vector<4x4xf32>, vector<4x256xf32>, vector<4x256xf32> -> vector<4x256xf32>
    %85 = arith.addf %80, %84 : vector<4x256xf32>
    %86 = vector.extract_strided_slice %35 {offsets = [0, 33], sizes = [4, 256], strides = [1, 1]} : vector<4x320xf32> to vector<4x256xf32>
    %87 = vector.broadcast %53 : vector<1x256xf32> to vector<4x256xf32>
    %88 = arith.mulf %86, %87 : vector<4x256xf32>
    %c1_46 = arith.constant 1 : index
    %c2_47 = arith.constant 2 : index
    %c0_48 = arith.constant 0 : index
    %c0_49 = arith.constant 0 : index
    %89 = vector.load %arg6[%c1_46, %c2_47, %c0_48, %c0_49] : memref<3x3x4x4xf32, #tpu.memory_space<vmem>>, vector<1x1x4x4xf32>
    %90 = vector.shape_cast %89 : vector<1x1x4x4xf32> to vector<4x4xf32>
    %cst_50 = arith.constant dense<0.000000e+00> : vector<4x256xf32>
    %91 = tpu.matmul %90, %88, %cst_50 {dimension_numbers = #tpu.dot_dimension_numbers<[1], [0], [0], [1], [0, 0, 1, 1], [], []>} : vector<4x4xf32>, vector<4x256xf32>, vector<4x256xf32> -> vector<4x256xf32>
    %92 = arith.addf %85, %91 : vector<4x256xf32>
    %93 = vector.extract_strided_slice %35 {offsets = [0, 47], sizes = [4, 256], strides = [1, 1]} : vector<4x320xf32> to vector<4x256xf32>
    %94 = vector.broadcast %49 : vector<1x256xf32> to vector<4x256xf32>
    %95 = arith.mulf %93, %94 : vector<4x256xf32>
    %c2_51 = arith.constant 2 : index
    %c0_52 = arith.constant 0 : index
    %c0_53 = arith.constant 0 : index
    %c0_54 = arith.constant 0 : index
    %96 = vector.load %arg6[%c2_51, %c0_52, %c0_53, %c0_54] : memref<3x3x4x4xf32, #tpu.memory_space<vmem>>, vector<1x1x4x4xf32>
    %97 = vector.shape_cast %96 : vector<1x1x4x4xf32> to vector<4x4xf32>
    %cst_55 = arith.constant dense<0.000000e+00> : vector<4x256xf32>
    %98 = tpu.matmul %97, %95, %cst_55 {dimension_numbers = #tpu.dot_dimension_numbers<[1], [0], [0], [1], [0, 0, 1, 1], [], []>} : vector<4x4xf32>, vector<4x256xf32>, vector<4x256xf32> -> vector<4x256xf32>
    %99 = arith.addf %92, %98 : vector<4x256xf32>
    %100 = vector.extract_strided_slice %35 {offsets = [0, 48], sizes = [4, 256], strides = [1, 1]} : vector<4x320xf32> to vector<4x256xf32>
    %c2_56 = arith.constant 2 : index
    %c1_57 = arith.constant 1 : index
    %c0_58 = arith.constant 0 : index
    %c0_59 = arith.constant 0 : index
    %101 = vector.load %arg6[%c2_56, %c1_57, %c0_58, %c0_59] : memref<3x3x4x4xf32, #tpu.memory_space<vmem>>, vector<1x1x4x4xf32>
    %102 = vector.shape_cast %101 : vector<1x1x4x4xf32> to vector<4x4xf32>
    %cst_60 = arith.constant dense<0.000000e+00> : vector<4x256xf32>
    %103 = tpu.matmul %102, %100, %cst_60 {dimension_numbers = #tpu.dot_dimension_numbers<[1], [0], [0], [1], [0, 0, 1, 1], [], []>} : vector<4x4xf32>, vector<4x256xf32>, vector<4x256xf32> -> vector<4x256xf32>
    %104 = arith.addf %99, %103 : vector<4x256xf32>
    %105 = vector.extract_strided_slice %35 {offsets = [0, 49], sizes = [4, 256], strides = [1, 1]} : vector<4x320xf32> to vector<4x256xf32>
    %106 = vector.broadcast %53 : vector<1x256xf32> to vector<4x256xf32>
    %107 = arith.mulf %105, %106 : vector<4x256xf32>
    %c2_61 = arith.constant 2 : index
    %c2_62 = arith.constant 2 : index
    %c0_63 = arith.constant 0 : index
    %c0_64 = arith.constant 0 : index
    %108 = vector.load %arg6[%c2_61, %c2_62, %c0_63, %c0_64] : memref<3x3x4x4xf32, #tpu.memory_space<vmem>>, vector<1x1x4x4xf32>
    %109 = vector.shape_cast %108 : vector<1x1x4x4xf32> to vector<4x4xf32>
    %cst_65 = arith.constant dense<0.000000e+00> : vector<4x256xf32>
    %110 = tpu.matmul %109, %107, %cst_65 {dimension_numbers = #tpu.dot_dimension_numbers<[1], [0], [0], [1], [0, 0, 1, 1], [], []>} : vector<4x4xf32>, vector<4x256xf32>, vector<4x256xf32> -> vector<4x256xf32>
    %111 = arith.addf %104, %110 : vector<4x256xf32>
    %c0_66 = arith.constant 0 : index
    %c0_67 = arith.constant 0 : index
    %112 = vector.load %arg7[%c0_66, %c0_67] : memref<4x1xf32, #tpu.memory_space<vmem>>, vector<4x1xf32>
    %113 = vector.broadcast %112 : vector<4x1xf32> to vector<4x256xf32>
    %114 = arith.mulf %111, %113 : vector<4x256xf32>
    %c0_68 = arith.constant 0 : index
    %c0_69 = arith.constant 0 : index
    %115 = vector.load %arg8[%c0_68, %c0_69] : memref<4x1xf32, #tpu.memory_space<vmem>>, vector<4x1xf32>
    %116 = vector.broadcast %115 : vector<4x1xf32> to vector<4x256xf32>
    %117 = arith.addf %114, %116 : vector<4x256xf32>
    %cst_70 = arith.constant 0.000000e+00 : f32
    %118 = vector.broadcast %cst_70 : f32 to vector<4x256xf32>
    %119 = arith.maximumf %117, %118 : vector<4x256xf32>
    %c0_71 = arith.constant 0 : index
    %c0_72 = arith.constant 0 : index
    %120 = vector.load %arg9[%c0_71, %c0_72] : memref<16x4xf32, #tpu.memory_space<vmem>>, vector<16x4xf32>
    %cst_73 = arith.constant dense<0.000000e+00> : vector<16x256xf32>
    %121 = tpu.matmul %120, %119, %cst_73 {dimension_numbers = #tpu.dot_dimension_numbers<[1], [0], [0], [1], [0, 0, 1, 1], [], []>} : vector<16x4xf32>, vector<4x256xf32>, vector<16x256xf32> -> vector<16x256xf32>
    %c0_74 = arith.constant 0 : index
    %c0_75 = arith.constant 0 : index
    %122 = vector.load %arg10[%c0_74, %c0_75] : memref<16x1xf32, #tpu.memory_space<vmem>>, vector<16x1xf32>
    %123 = vector.broadcast %122 : vector<16x1xf32> to vector<16x256xf32>
    %124 = arith.mulf %121, %123 : vector<16x256xf32>
    %c0_76 = arith.constant 0 : index
    %c0_77 = arith.constant 0 : index
    %125 = vector.load %arg11[%c0_76, %c0_77] : memref<16x1xf32, #tpu.memory_space<vmem>>, vector<16x1xf32>
    %126 = vector.broadcast %125 : vector<16x1xf32> to vector<16x256xf32>
    %127 = arith.addf %124, %126 : vector<16x256xf32>
    %128 = vector.extract_strided_slice %1 {offsets = [0, 32], sizes = [16, 256], strides = [1, 1]} : vector<16x320xf32> to vector<16x256xf32>
    %129 = arith.addf %127, %128 : vector<16x256xf32>
    %cst_78 = arith.constant 0.000000e+00 : f32
    %130 = vector.broadcast %cst_78 : f32 to vector<16x256xf32>
    %131 = arith.maximumf %129, %130 : vector<16x256xf32>
    %c0_79 = arith.constant 0 : index
    %c0_80 = arith.constant 0 : index
    %c0_81 = arith.constant 0 : index
    %132 = vector.load %arg12[%c0_79, %c0_80, %c0_81] : memref<1x16x256xf32, #tpu.memory_space<vmem>>, vector<1x16x256xf32>
    %133 = vector.shape_cast %132 : vector<1x16x256xf32> to vector<16x256xf32>
    %134 = vector.shape_cast %131 : vector<16x256xf32> to vector<1x16x256xf32>
    tpu.vector_store %arg12[%c0_79, %c0_80, %c0_81], %134 {strides = array<i32>} : memref<1x16x256xf32, #tpu.memory_space<vmem>>, vector<1x16x256xf32>,
    return
  }
  func.func @transform_0(%arg0: i32, %arg1: i32) -> (i32, i32, i32, i32) {
    %c0_i32 = arith.constant 0 : i32
    %c0_i32_0 = arith.constant 0 : i32
    %c0_i32_1 = arith.constant 0 : i32
    return %arg0, %arg1, %c0_i32, %c0_i32_0 : i32, i32, i32, i32
  }
  func.func @transform_1(%arg0: i32, %arg1: i32) -> (i32, i32) {
    %c0_i32 = arith.constant 0 : i32
    %c0_i32_0 = arith.constant 0 : i32
    %c0_i32_1 = arith.constant 0 : i32
    return %c0_i32, %c0_i32_0 : i32, i32
  }
  func.func @transform_2(%arg0: i32, %arg1: i32) -> (i32, i32) {
    %c0_i32 = arith.constant 0 : i32
    %c0_i32_0 = arith.constant 0 : i32
    %c0_i32_1 = arith.constant 0 : i32
    return %c0_i32, %c0_i32_0 : i32, i32
  }
  func.func @transform_3(%arg0: i32, %arg1: i32) -> (i32, i32) {
    %c0_i32 = arith.constant 0 : i32
    %c0_i32_0 = arith.constant 0 : i32
    %c0_i32_1 = arith.constant 0 : i32
    return %c0_i32, %c0_i32_0 : i32, i32
  }
  func.func @transform_4(%arg0: i32, %arg1: i32) -> (i32, i32, i32, i32) {
    %c0_i32 = arith.constant 0 : i32
    %c0_i32_0 = arith.constant 0 : i32
    %c0_i32_1 = arith.constant 0 : i32
    %c0_i32_2 = arith.constant 0 : i32
    %c0_i32_3 = arith.constant 0 : i32
    return %c0_i32, %c0_i32_0, %c0_i32_1, %c0_i32_2 : i32, i32, i32, i32
  }
  func.func @transform_5(%arg0: i32, %arg1: i32) -> (i32, i32) {
    %c0_i32 = arith.constant 0 : i32
    %c0_i32_0 = arith.constant 0 : i32
    %c0_i32_1 = arith.constant 0 : i32
    return %c0_i32, %c0_i32_0 : i32, i32
  }
  func.func @transform_6(%arg0: i32, %arg1: i32) -> (i32, i32) {
    %c0_i32 = arith.constant 0 : i32
    %c0_i32_0 = arith.constant 0 : i32
    %c0_i32_1 = arith.constant 0 : i32
    return %c0_i32, %c0_i32_0 : i32, i32
  }
  func.func @transform_7(%arg0: i32, %arg1: i32) -> (i32, i32) {
    %c0_i32 = arith.constant 0 : i32
    %c0_i32_0 = arith.constant 0 : i32
    %c0_i32_1 = arith.constant 0 : i32
    return %c0_i32, %c0_i32_0 : i32, i32
  }
  func.func @transform_8(%arg0: i32, %arg1: i32) -> (i32, i32) {
    %c0_i32 = arith.constant 0 : i32
    %c0_i32_0 = arith.constant 0 : i32
    %c0_i32_1 = arith.constant 0 : i32
    return %c0_i32, %c0_i32_0 : i32, i32
  }
  func.func @transform_9(%arg0: i32, %arg1: i32) -> (i32, i32) {
    %c0_i32 = arith.constant 0 : i32
    %c0_i32_0 = arith.constant 0 : i32
    %c0_i32_1 = arith.constant 0 : i32
    return %c0_i32, %c0_i32_0 : i32, i32
  }
  func.func @transform_10(%arg0: i32, %arg1: i32) -> (i32, i32, i32) {
    %c0_i32 = arith.constant 0 : i32
    %c0_i32_0 = arith.constant 0 : i32
    return %arg0, %c0_i32, %arg1 : i32, i32, i32
  }
}

</mosaic_0001>

<llo_original>
// kernel: tpu_custom_call.1
$region0: #{tpu_custom_call.1}
  #allocation0 [shape = 'u32[]', space=smem, size = 0x4, offset = 0x4, fixed_abs, tag = 'smem constant byte address 0x4 - core index']
  #allocation1 [shape = 'u32[72,128]{1,0:T(1,128)}', space=vmem, size = 0x9000, scoped, tag = 'internal scratch']
  %s0 = inlined_call_operand.hbm [shape: f32[2,1,16,320], index: 0, kind: input, shape index: {}]
  %s1 = inlined_call_operand.vmem [shape: f32[4,16], index: 1, kind: input, shape index: {}]
  %s2 = inlined_call_operand.vmem [shape: f32[4,1], index: 2, kind: input, shape index: {}]
  %s3 = inlined_call_operand.vmem [shape: f32[4,1], index: 3, kind: input, shape index: {}]
  %s4 = inlined_call_operand.hbm [shape: f32[3,3,4,4], index: 4, kind: input, shape index: {}]
  %s5 = inlined_call_operand.vmem [shape: f32[4,1], index: 5, kind: input, shape index: {}]
  %s6 = inlined_call_operand.vmem [shape: f32[4,1], index: 6, kind: input, shape index: {}]
  %s7 = inlined_call_operand.vmem [shape: f32[16,4], index: 7, kind: input, shape index: {}]
  %s8 = inlined_call_operand.vmem [shape: f32[16,1], index: 8, kind: input, shape index: {}]
  %s9 = inlined_call_operand.vmem [shape: f32[16,1], index: 9, kind: input, shape index: {}]
  %s10 = inlined_call_operand.hbm [shape: f32[2,16,256], index: 10, kind: output, shape index: {}]
  %s11 = sld [smem:[#allocation0]]
  $region81: #{tpu_custom_call.1} parent=0
    _
  %s13 = ssub.s32 1, %s11
  %s14 = scalar_select 0, %s13, %s11
  $region1: #{tpu_custom_call.1} parent=0
    #allocation2 [shape = 'u8[49152]{0}', space=vmem, size = 0xc000, scoped, tag = 'input window, operand 0']
    #allocation3 [shape = 's32[2]{0}', space=sflag, size = 0x8, scoped, tag = 'scoped memory for tpu_custom_call.1']
    #allocation4 [shape = 's32[2]{0}', space=sflag, size = 0x8, scoped, tag = 'scoped memory for tpu_custom_call.1']
    #allocation5 [shape = 'u8[18432]{0}', space=vmem, size = 0x4800, scoped, tag = 'input window, operand 4, single buffered']
    #allocation6 [shape = 's32[1]{0}', space=sflag, size = 0x4, scoped, tag = 'scoped memory for tpu_custom_call.1']
    #allocation7 [shape = 'u8[32768]{0}', space=vmem, size = 0x8000, scoped, tag = 'output window, operand 0']
    %15 = vsyncpa [#allocation3], 0
    %s16 = scalar_lea.sflag [#allocation3], 1
    %17 = vsyncpa %s16, 0
    %18 = vsyncpa [#allocation6], 0
    %19 = vsyncpa [#allocation4], 0
    %s20 = scalar_lea.sflag [#allocation4], 1
    %21 = vsyncpa %s20, 0
    loop: start=0, step=1, limit=4
    $region2: #{tpu_custom_call.1} parent=1 // loop_pre_header
      _
    $region3: #{tpu_custom_call.1} parent=1 // loop_header
      %s23 = sphi 0, %s27
      %p24 = scmp.ge.s32.totalorder %s23, 4
      %s30 = sphi 0, %s42
      %s31 = sphi 0, %s38
      %s32 = sphi 0, %s30
      %s33 = sphi 0, %s31
      %s34 = sphi 0, %s32
      %s35 = sphi 0, %s33
      %s47 = sphi 0, %s49
      %s50 = sphi 0, %s47
      %s51 = sphi 0, %s50
      %s67 = sphi 0, %s51
      %s71 = sphi 0, %s71
      %s73 = sphi 0, %s71
      %s74 = sphi 0, %s73
      %s88 = sphi 0, %s74
      %s92 = sphi 0, %s92
      %s94 = sphi 0, %s92
      %s95 = sphi 0, %s94
      %s109 = sphi 0, %s95
      %s113 = sphi 0, %s113
      %s115 = sphi 0, %s113
      %s116 = sphi 0, %s115
      %s130 = sphi 0, %s116
      %s134 = sphi 0, %s134
      %s136 = sphi 0, %s134
      %s137 = sphi 0, %s136
      %s151 = sphi 0, %s137
      %s155 = sphi 0, %s155
      %s157 = sphi 0, %s155
      %s158 = sphi 0, %s157
      %s172 = sphi 0, %s158
      %s176 = sphi 0, %s176
      %s178 = sphi 0, %s176
      %s179 = sphi 0, %s178
      %s193 = sphi 0, %s179
      %s197 = sphi 0, %s197
      %s199 = sphi 0, %s197
      %s200 = sphi 0, %s199
      %s214 = sphi 0, %s200
      %s218 = sphi 0, %s218
      %s220 = sphi 0, %s218
      %s221 = sphi 0, %s220
      %s235 = sphi 0, %s221
      %s239 = sphi 0, %s239
      %s241 = sphi 0, %s239
      %s242 = sphi 0, %s241
      %s256 = sphi 0, %s242
      %s264 = sphi 0, %s266
      %s267 = sphi 0, %s264
      %s268 = sphi 0, %s267
      %s284 = sphi 0, %s268
    $region4: #{tpu_custom_call.1} parent=1 // loop_header_branch
      %26 = sbr.rel (%p24) target = $region8
    $region5: #{tpu_custom_call.1} parent=1 // loop_body
      %s28 = ssub.s32 %s23, 1
      %s29 = ssub.s32 %s23, 2
      %s36 = sadd.s32 1, %s31
      %p37 = scmp.ge.s32.totalorder %s36, 1
      %s38 = scalar_select %p37, 0, %s36
      %s39 = sadd.s32 1, %s30
      %s40 = scalar_select %p37, %s39, %s30
      %p41 = scmp.ge.s32.totalorder %s40, 2
      %s42 = scalar_select %p41, 0, %s40
      %s43 = ssub.s32 %s30, %s42
      %s44 = ssub.s32 %s31, %s38
      %s45 = sor.u32 %s43, %s44
      %p46 = scmp.eq.s32.totalorder %s45, 0
      %s48 = sadd.s32 %s47, 1
      %s49 = scalar_select %p46, %s47, %s48
      %p52 = pneg %p46
      %p53 = scmp.eq.s32.totalorder %s23, 1
      %p54 = por %p52, %p53
      %p55 = scmp.ne.s32.totalorder %s47, %s50
      %p56 = scmp.eq.s32.totalorder %s23, 0
      %p57 = por %p55, %p56
      %p58 = scmp.ne.s32.totalorder %s47, %s50
      %p59 = scmp.eq.s32.totalorder %s28, 1
      %p60 = por %p58, %p59
      %p61 = scmp.ne.s32.totalorder %s50, %s51
      %p62 = scmp.eq.s32.totalorder %s28, 0
      %p63 = por %p61, %p62
      %p64 = scmp.ne.s32.totalorder %s50, %s51
      %p65 = scmp.eq.s32.totalorder %s29, 1
      %p66 = por %p64, %p65
      %p68 = scmp.ne.s32.totalorder %s51, %s67
      %p69 = scmp.eq.s32.totalorder %s29, 0
      %p70 = por %p68, %p69
      %s72 = sadd.s32 %s71, 1
      %p75 = scmp.eq.s32.totalorder %s23, 1
      %p76 = scmp.ne.s32.totalorder %s71, %s73
      %p77 = scmp.eq.s32.totalorder %s23, 0
      %p78 = por %p76, %p77
      %p79 = scmp.ne.s32.totalorder %s71, %s73
      %p80 = scmp.eq.s32.totalorder %s28, 1
      %p81 = por %p79, %p80
      %p82 = scmp.ne.s32.totalorder %s73, %s74
      %p83 = scmp.eq.s32.totalorder %s28, 0
      %p84 = por %p82, %p83
      %p85 = scmp.ne.s32.totalorder %s73, %s74
      %p86 = scmp.eq.s32.totalorder %s29, 1
      %p87 = por %p85, %p86
      %p89 = scmp.ne.s32.totalorder %s74, %s88
      %p90 = scmp.eq.s32.totalorder %s29, 0
      %p91 = por %p89, %p90
      %s93 = sadd.s32 %s92, 1
      %p96 = scmp.eq.s32.totalorder %s23, 1
      %p97 = scmp.ne.s32.totalorder %s92, %s94
      %p98 = scmp.eq.s32.totalorder %s23, 0
      %p99 = por %p97, %p98
      %p100 = scmp.ne.s32.totalorder %s92, %s94
      %p101 = scmp.eq.s32.totalorder %s28, 1
      %p102 = por %p100, %p101
      %p103 = scmp.ne.s32.totalorder %s94, %s95
      %p104 = scmp.eq.s32.totalorder %s28, 0
      %p105 = por %p103, %p104
      %p106 = scmp.ne.s32.totalorder %s94, %s95
      %p107 = scmp.eq.s32.totalorder %s29, 1
      %p108 = por %p106, %p107
      %p110 = scmp.ne.s32.totalorder %s95, %s109
      %p111 = scmp.eq.s32.totalorder %s29, 0
      %p112 = por %p110, %p111
      %s114 = sadd.s32 %s113, 1
      %p117 = scmp.eq.s32.totalorder %s23, 1
      %p118 = scmp.ne.s32.totalorder %s113, %s115
      %p119 = scmp.eq.s32.totalorder %s23, 0
      %p120 = por %p118, %p119
      %p121 = scmp.ne.s32.totalorder %s113, %s115
      %p122 = scmp.eq.s32.totalorder %s28, 1
      %p123 = por %p121, %p122
      %p124 = scmp.ne.s32.totalorder %s115, %s116
      %p125 = scmp.eq.s32.totalorder %s28, 0
      %p126 = por %p124, %p125
      %p127 = scmp.ne.s32.totalorder %s115, %s116
      %p128 = scmp.eq.s32.totalorder %s29, 1
      %p129 = por %p127, %p128
      %p131 = scmp.ne.s32.totalorder %s116, %s130
      %p132 = scmp.eq.s32.totalorder %s29, 0
      %p133 = por %p131, %p132
      %s135 = sadd.s32 %s134, 1
      %p138 = scmp.eq.s32.totalorder %s23, 1
      %p139 = scmp.ne.s32.totalorder %s134, %s136
      %p140 = scmp.eq.s32.totalorder %s23, 0
      %p141 = por %p139, %p140
      %p142 = scmp.ne.s32.totalorder %s134, %s136
      %p143 = scmp.eq.s32.totalorder %s28, 1
      %p144 = por %p142, %p143
      %p145 = scmp.ne.s32.totalorder %s136, %s137
      %p146 = scmp.eq.s32.totalorder %s28, 0
      %p147 = por %p145, %p146
      %p148 = scmp.ne.s32.totalorder %s136, %s137
      %p149 = scmp.eq.s32.totalorder %s29, 1
      %p150 = por %p148, %p149
      %p152 = scmp.ne.s32.totalorder %s137, %s151
      %p153 = scmp.eq.s32.totalorder %s29, 0
      %p154 = por %p152, %p153
      %s156 = sadd.s32 %s155, 1
      %p159 = scmp.eq.s32.totalorder %s23, 1
      %p160 = scmp.ne.s32.totalorder %s155, %s157
      %p161 = scmp.eq.s32.totalorder %s23, 0
      %p162 = por %p160, %p161
      %p163 = scmp.ne.s32.totalorder %s155, %s157
      %p164 = scmp.eq.s32.totalorder %s28, 1
      %p165 = por %p163, %p164
      %p166 = scmp.ne.s32.totalorder %s157, %s158
      %p167 = scmp.eq.s32.totalorder %s28, 0
      %p168 = por %p166, %p167
      %p169 = scmp.ne.s32.totalorder %s157, %s158
      %p170 = scmp.eq.s32.totalorder %s29, 1
      %p171 = por %p169, %p170
      %p173 = scmp.ne.s32.totalorder %s158, %s172
      %p174 = scmp.eq.s32.totalorder %s29, 0
      %p175 = por %p173, %p174
      %s177 = sadd.s32 %s176, 1
      %p180 = scmp.eq.s32.totalorder %s23, 1
      %p181 = scmp.ne.s32.totalorder %s176, %s178
      %p182 = scmp.eq.s32.totalorder %s23, 0
      %p183 = por %p181, %p182
      %p184 = scmp.ne.s32.totalorder %s176, %s178
      %p185 = scmp.eq.s32.totalorder %s28, 1
      %p186 = por %p184, %p185
      %p187 = scmp.ne.s32.totalorder %s178, %s179
      %p188 = scmp.eq.s32.totalorder %s28, 0
      %p189 = por %p187, %p188
      %p190 = scmp.ne.s32.totalorder %s178, %s179
      %p191 = scmp.eq.s32.totalorder %s29, 1
      %p192 = por %p190, %p191
      %p194 = scmp.ne.s32.totalorder %s179, %s193
      %p195 = scmp.eq.s32.totalorder %s29, 0
      %p196 = por %p194, %p195
      %s198 = sadd.s32 %s197, 1
      %p201 = scmp.eq.s32.totalorder %s23, 1
      %p202 = scmp.ne.s32.totalorder %s197, %s199
      %p203 = scmp.eq.s32.totalorder %s23, 0
      %p204 = por %p202, %p203
      %p205 = scmp.ne.s32.totalorder %s197, %s199
      %p206 = scmp.eq.s32.totalorder %s28, 1
      %p207 = por %p205, %p206
      %p208 = scmp.ne.s32.totalorder %s199, %s200
      %p209 = scmp.eq.s32.totalorder %s28, 0
      %p210 = por %p208, %p209
      %p211 = scmp.ne.s32.totalorder %s199, %s200
      %p212 = scmp.eq.s32.totalorder %s29, 1
      %p213 = por %p211, %p212
      %p215 = scmp.ne.s32.totalorder %s200, %s214
      %p216 = scmp.eq.s32.totalorder %s29, 0
      %p217 = por %p215, %p216
      %s219 = sadd.s32 %s218, 1
      %p222 = scmp.eq.s32.totalorder %s23, 1
      %p223 = scmp.ne.s32.totalorder %s218, %s220
      %p224 = scmp.eq.s32.totalorder %s23, 0
      %p225 = por %p223, %p224
      %p226 = scmp.ne.s32.totalorder %s218, %s220
      %p227 = scmp.eq.s32.totalorder %s28, 1
      %p228 = por %p226, %p227
      %p229 = scmp.ne.s32.totalorder %s220, %s221
      %p230 = scmp.eq.s32.totalorder %s28, 0
      %p231 = por %p229, %p230
      %p232 = scmp.ne.s32.totalorder %s220, %s221
      %p233 = scmp.eq.s32.totalorder %s29, 1
      %p234 = por %p232, %p233
      %p236 = scmp.ne.s32.totalorder %s221, %s235
      %p237 = scmp.eq.s32.totalorder %s29, 0
      %p238 = por %p236, %p237
      %s240 = sadd.s32 %s239, 1
      %p243 = scmp.eq.s32.totalorder %s23, 1
      %p244 = scmp.ne.s32.totalorder %s239, %s241
      %p245 = scmp.eq.s32.totalorder %s23, 0
      %p246 = por %p244, %p245
      %p247 = scmp.ne.s32.totalorder %s239, %s241
      %p248 = scmp.eq.s32.totalorder %s28, 1
      %p249 = por %p247, %p248
      %p250 = scmp.ne.s32.totalorder %s241, %s242
      %p251 = scmp.eq.s32.totalorder %s28, 0
      %p252 = por %p250, %p251
      %p253 = scmp.ne.s32.totalorder %s241, %s242
      %p254 = scmp.eq.s32.totalorder %s29, 1
      %p255 = por %p253, %p254
      %p257 = scmp.ne.s32.totalorder %s242, %s256
      %p258 = scmp.eq.s32.totalorder %s29, 0
      %p259 = por %p257, %p258
      %s260 = ssub.s32 %s30, %s42
      %s261 = ssub.s32 %s31, %s38
      %s262 = sor.u32 %s260, %s261
      %p263 = scmp.eq.s32.totalorder %s262, 0
      %s265 = sadd.s32 %s264, 1
      %s266 = scalar_select %p263, %s264, %s265
      %p269 = pneg %p263
      %p270 = scmp.eq.s32.totalorder %s23, 1
      %p271 = por %p269, %p270
      %p272 = scmp.ne.s32.totalorder %s264, %s267
      %p273 = scmp.eq.s32.totalorder %s23, 0
      %p274 = por %p272, %p273
      %p275 = scmp.ne.s32.totalorder %s264, %s267
      %p276 = scmp.eq.s32.totalorder %s28, 1
      %p277 = por %p275, %p276
      %p278 = scmp.ne.s32.totalorder %s267, %s268
      %p279 = scmp.eq.s32.totalorder %s28, 0
      %p280 = por %p278, %p279
      %p281 = scmp.ne.s32.totalorder %s267, %s268
      %p282 = scmp.eq.s32.totalorder %s29, 1
      %p283 = por %p281, %p282
      %p285 = scmp.ne.s32.totalorder %s268, %s284
      %p286 = scmp.eq.s32.totalorder %s29, 0
      %p287 = por %p285, %p286
      %p288 = scmp.le.s32.totalorder 1, %s23
      %p289 = scmp.lt.s32.totalorder %s23, 3
      %p290 = pnand %p288, %p289
      %p291 = pneg %p290
      // Predicated region
      $region9: #{tpu_custom_call.1} parent=5 // pred_check
        _
      $region10: #{tpu_custom_call.1} parent=5 // pred_check_branch
        %293 = sbr.rel (%p290) target = $region12
      $region11: #{tpu_custom_call.1} parent=5 // pred_region
        %s294 = ssub.s32 %s23, 1
        // Predicated region
        $region13: #{tpu_custom_call.1} parent=11 // pred_check
          %p295 = pneg %p84
        $region14: #{tpu_custom_call.1} parent=11 // pred_check_branch
          %297 = sbr.rel (%p295) target = $region16
        $region15: #{tpu_custom_call.1} parent=11 // pred_region
          _
        $region16: #{tpu_custom_call.1} parent=11 // pred_fallthru
          _
        // Predicated region
        $region17: #{tpu_custom_call.1} parent=11 // pred_check
          %p298 = pneg %p105
        $region18: #{tpu_custom_call.1} parent=11 // pred_check_branch
          %300 = sbr.rel (%p298) target = $region20
        $region19: #{tpu_custom_call.1} parent=11 // pred_region
          _
        $region20: #{tpu_custom_call.1} parent=11 // pred_fallthru
          _
        // Predicated region
        $region21: #{tpu_custom_call.1} parent=11 // pred_check
          %p301 = pneg %p126
        $region22: #{tpu_custom_call.1} parent=11 // pred_check_branch
          %303 = sbr.rel (%p301) target = $region24
        $region23: #{tpu_custom_call.1} parent=11 // pred_region
          _
        $region24: #{tpu_custom_call.1} parent=11 // pred_fallthru
          _
        // Predicated region
        $region25: #{tpu_custom_call.1} parent=11 // pred_check
          %p304 = pneg %p147
        $region26: #{tpu_custom_call.1} parent=11 // pred_check_branch
          %306 = sbr.rel (%p304) target = $region28
        $region27: #{tpu_custom_call.1} parent=11 // pred_region
          %308 = vsyncadd [#allocation6], 0
          %s309 = sshll.u32 %s4, 4
          %s310 = int_to_ptr.hbm [resolvable:$true] %s309
          %s311 = sshll.u32 [#allocation5], 4
          %s312 = int_to_ptr.vmem [resolvable:$true] %s311
          %317 = dma.hbm_to_vmem [thread:$0]  %s310, 576, %s312, [#allocation6], 64, 64, 4
        $region28: #{tpu_custom_call.1} parent=11 // pred_fallthru
          _
        // Predicated region
        $region29: #{tpu_custom_call.1} parent=11 // pred_check
          %p318 = pneg %p168
        $region30: #{tpu_custom_call.1} parent=11 // pred_check_branch
          %320 = sbr.rel (%p318) target = $region32
        $region31: #{tpu_custom_call.1} parent=11 // pred_region
          _
        $region32: #{tpu_custom_call.1} parent=11 // pred_fallthru
          _
        // Predicated region
        $region33: #{tpu_custom_call.1} parent=11 // pred_check
          %p321 = pneg %p189
        $region34: #{tpu_custom_call.1} parent=11 // pred_check_branch
          %323 = sbr.rel (%p321) target = $region36
        $region35: #{tpu_custom_call.1} parent=11 // pred_region
          _
        $region36: #{tpu_custom_call.1} parent=11 // pred_fallthru
          _
        // Predicated region
        $region37: #{tpu_custom_call.1} parent=11 // pred_check
          %p324 = pneg %p210
        $region38: #{tpu_custom_call.1} parent=11 // pred_check_branch
          %326 = sbr.rel (%p324) target = $region40
        $region39: #{tpu_custom_call.1} parent=11 // pred_region
          _
        $region40: #{tpu_custom_call.1} parent=11 // pred_fallthru
          _
        // Predicated region
        $region41: #{tpu_custom_call.1} parent=11 // pred_check
          %p327 = pneg %p231
        $region42: #{tpu_custom_call.1} parent=11 // pred_check_branch
          %329 = sbr.rel (%p327) target = $region44
        $region43: #{tpu_custom_call.1} parent=11 // pred_region
          _
        $region44: #{tpu_custom_call.1} parent=11 // pred_fallthru
          _
        // Predicated region
        $region45: #{tpu_custom_call.1} parent=11 // pred_check
          %p330 = pneg %p252
        $region46: #{tpu_custom_call.1} parent=11 // pred_check_branch
          %332 = sbr.rel (%p330) target = $region48
        $region47: #{tpu_custom_call.1} parent=11 // pred_region
          _
        $region48: #{tpu_custom_call.1} parent=11 // pred_fallthru
          _
      $region12: #{tpu_custom_call.1} parent=5 // pred_fallthru
        _
      %p333 = scmp.lt.s32.totalorder %s23, 2
      // Predicated region
      $region49: #{tpu_custom_call.1} parent=5 // pred_check
        %p334 = pneg %p333
      $region50: #{tpu_custom_call.1} parent=5 // pred_check_branch
        %336 = sbr.rel (%p334) target = $region52
      $region51: #{tpu_custom_call.1} parent=5 // pred_region
        // Predicated region
        $region53: #{tpu_custom_call.1} parent=51 // pred_check
          %p337 = pneg %p57
        $region54: #{tpu_custom_call.1} parent=51 // pred_check_branch
          %339 = sbr.rel (%p337) target = $region56
        $region55: #{tpu_custom_call.1} parent=51 // pred_region
          %s340 = sand.u32 %s47, 1
          %s341 = scalar_lea.sflag [#allocation3], %s340
          %s342 = sand.u32 %s47, 1
          %s343 = smul.addr %s342, 48
          %s344 = scalar_lea.vmem [#allocation2], %s343
          %346 = vsyncadd %s341, 0
          %s347 = smul.addr %s31, 6
          %s348 = smul.addr %s30, 6
          %s349 = sadd.s32 %s347, %s348
          %s350 = smul.addr %s349, 8
          %s351 = scalar_lea.hbm %s0, %s350
          %s352 = sshll.u32 %s351, 4
          %s353 = int_to_ptr.hbm [resolvable:$true] %s352
          %s354 = sshll.u32 %s344, 4
          %s355 = int_to_ptr.vmem [resolvable:$true] %s354
          %360 = dma.hbm_to_vmem [thread:$0]  %s353, 768, %s355, %s341, 384, 384, 24
        $region56: #{tpu_custom_call.1} parent=51 // pred_fallthru
          _
      $region52: #{tpu_custom_call.1} parent=5 // pred_fallthru
        _
      %p361 = scmp.le.s32.totalorder 1, %s23
      %p362 = scmp.lt.s32.totalorder %s23, 3
      %p363 = pnand %p361, %p362
      %p364 = pneg %p363
      // Predicated region
      $region57: #{tpu_custom_call.1} parent=5 // pred_check
        _
      $region58: #{tpu_custom_call.1} parent=5 // pred_check_branch
        %366 = sbr.rel (%p363) target = $region60
      $region59: #{tpu_custom_call.1} parent=5 // pred_region
        %s367 = ssub.s32 %s23, 1
        %s368 = sand.u32 %s50, 1
        %s369 = scalar_lea.sflag [#allocation3], %s368
        %s370 = sand.u32 %s50, 1
        %s371 = smul.addr %s370, 48
        %s372 = scalar_lea.vmem [#allocation2], %s371
        // Predicated region
        $region61: #{tpu_custom_call.1} parent=59 // pred_check
          %p373 = pneg %p63
        $region62: #{tpu_custom_call.1} parent=59 // pred_check_branch
          %375 = sbr.rel (%p373) target = $region64
        $region63: #{tpu_custom_call.1} parent=59 // pred_region
          %377 = dma.done %s369, 768
        $region64: #{tpu_custom_call.1} parent=59 // pred_fallthru
          _
        // Predicated region
        $region65: #{tpu_custom_call.1} parent=59 // pred_check
          %p378 = pneg %p147
        $region66: #{tpu_custom_call.1} parent=59 // pred_check_branch
          %380 = sbr.rel (%p378) target = $region68
        $region67: #{tpu_custom_call.1} parent=59 // pred_region
          %382 = dma.done [#allocation6], 576
        $region68: #{tpu_custom_call.1} parent=59 // pred_fallthru
          _
        %s383 = sand.u32 %s50, 1
        %s384 = scalar_lea.sflag [#allocation3], %s383
        %s385 = sand.u32 %s50, 1
        %s386 = smul.addr %s385, 48
        %s387 = scalar_lea.vmem [#allocation2], %s386
        %p388 = pneg %p63
        %p389 = pneg %p60
        %p390 = pneg %p84
        %p391 = pneg %p81
        %p392 = pneg %p105
        %p393 = pneg %p102
        %p394 = pneg %p126
        %p395 = pneg %p123
        %p396 = pneg %p147
        %p397 = pneg %p144
        %p398 = pneg %p168
        %p399 = pneg %p165
        %p400 = pneg %p189
        %p401 = pneg %p186
        %p402 = pneg %p210
        %p403 = pneg %p207
        %p404 = pneg %p231
        %p405 = pneg %p228
        %p406 = pneg %p252
        %p407 = pneg %p249
        %p408 = pneg %p280
        %p409 = pneg %p277
        %s410 = sand.u32 %s267, 1
        %s411 = scalar_lea.sflag [#allocation4], %s410
        %s412 = sand.u32 %s267, 1
        %s413 = smul.addr %s412, 32
        %s414 = scalar_lea.vmem [#allocation7], %s413
        %s415 = smul.u32 2, %s33
        %v416 = vld [vmem:[%s372] sm:$0xff]
        %v417 = vld [vmem:[%s372 + $0x8] sm:$0xff]
        %v418 = vld [vmem:[%s372 + $0x10] sm:$0xff]
        %v419 = vld [vmem:[%s372 + $0x18] sm:$0xff]
        %v420 = vld [vmem:[%s372 + $0x20] sm:$0xff]
        %v421 = vld [vmem:[%s372 + $0x28] sm:$0xff]
        %v422 = vld [vmem:[%s1] sm:$0xf]
        %vm423 = vcmask 130048
        %v425 = vsel %vm423, %v422, 0
        %427 = vmatpush.msra.mxu0 0.0
        %428 = vmatpush.msra.mxu0 0.0
        %429 = vmatpush.msra.mxu0 0.0
        %430 = vmatpush.msra.mxu0 0.0
        %431 = vmatpush.msra.mxu0 0.0
        %432 = vmatpush.msra.mxu0 0.0
        %433 = vmatpush.msra.mxu0 0.0
        %434 = vmatpush.msra.mxu0 0.0
        %435 = vmatpush.msra.mxu0 0.0
        %436 = vmatpush.msra.mxu0 0.0
        %437 = vmatpush.msra.mxu0 0.0
        %438 = vmatpush.msra.mxu0 0.0
        %439 = vmatpush.msra.mxu0 0.0
        %440 = vmatpush.msra.mxu0 0.0
        %441 = vmatpush.msra.mxu0 %v419
        %442 = vmatpush.msra.mxu0 %v416
        %443 = vmatmul.f32.gmra.mxu0 %v425
        %v444 = vpop.f32.mrf.mxu0
        %v445 = vadd.f32 0.0, %v444
        %446 = vdwg.mxu0
        %447 = vmatpush.msra.mxu0 0.0
        %448 = vmatpush.msra.mxu0 0.0
        %449 = vmatpush.msra.mxu0 0.0
        %450 = vmatpush.msra.mxu0 0.0
        %451 = vmatpush.msra.mxu0 0.0
        %452 = vmatpush.msra.mxu0 0.0
        %453 = vmatpush.msra.mxu0 0.0
        %454 = vmatpush.msra.mxu0 0.0
        %455 = vmatpush.msra.mxu0 0.0
        %456 = vmatpush.msra.mxu0 0.0
        %457 = vmatpush.msra.mxu0 0.0
        %458 = vmatpush.msra.mxu0 0.0
        %459 = vmatpush.msra.mxu0 0.0
        %460 = vmatpush.msra.mxu0 0.0
        %461 = vmatpush.msra.mxu0 %v420
        %462 = vmatpush.msra.mxu0 %v417
        %463 = vmatmul.f32.gmra.mxu0 %v425
        %v464 = vpop.f32.mrf.mxu0
        %v465 = vadd.f32 0.0, %v464
        %466 = vdwg.mxu0
        %467 = vmatpush.msra.mxu0 0.0
        %468 = vmatpush.msra.mxu0 0.0
        %469 = vmatpush.msra.mxu0 0.0
        %470 = vmatpush.msra.mxu0 0.0
        %471 = vmatpush.msra.mxu0 0.0
        %472 = vmatpush.msra.mxu0 0.0
        %473 = vmatpush.msra.mxu0 0.0
        %474 = vmatpush.msra.mxu0 0.0
        %475 = vmatpush.msra.mxu0 0.0
        %476 = vmatpush.msra.mxu0 0.0
        %477 = vmatpush.msra.mxu0 0.0
        %478 = vmatpush.msra.mxu0 0.0
        %479 = vmatpush.msra.mxu0 0.0
        %480 = vmatpush.msra.mxu0 0.0
        %481 = vmatpush.msra.mxu0 %v421
        %482 = vmatpush.msra.mxu0 %v418
        %483 = vmatmul.f32.gmra.mxu0 %v425
        %v484 = vpop.f32.mrf.mxu0
        %v485 = vadd.f32 0.0, %v484
        %486 = vdwg.mxu0
        %v487 = vld [vmem:[%s2] sm:$0xf]
        %489 = vset.pattern.permute.xlu0 0
        %490 = vperm.xlu0 %489, %v487
        %v491 = vpop.permute.xlu0 %490
        %v493 = vmul.f32 %v445, %v491
        %v494 = vmul.f32 %v465, %v491
        %v495 = vmul.f32 %v485, %v491
        %v496 = vld [vmem:[%s3] sm:$0xf]
        %498 = vset.pattern.permute.xlu0 0
        %499 = vperm.xlu0 %498, %v496
        %v500 = vpop.permute.xlu0 %499
        %v502 = vadd.f32 %v493, %v500
        %v503 = vadd.f32 %v494, %v500
        %v504 = vadd.f32 %v495, %v500
        %v505 = vmax.f32 %v502, 0.0
        %v506 = vmax.f32 %v503, 0.0
        %v507 = vmax.f32 %v504, 0.0
        %v508 = vlaneseq
        %v509 = vand.u32 %v508, 127
        %v510 = vadd.s32 %v509, 128
        %v511 = vadd.s32 %v509, 256
        %p512 = scmp.eq.s32.totalorder %s33, 0
        %s513 = scalar_select %p512, 16, 320
        %s514 = scalar_select %p512, 32, 320
        %s515 = scalar_select %p512, 288, 320
        %s516 = scalar_select %p512, 304, 320
        %v517 = vstv %s513
        %vm518 = vcmp.ge.s32.totalorder %v509, %v517
        %vm519 = vcmp.ge.s32.totalorder %v510, %v517
        %vm520 = vcmp.ge.s32.totalorder %v511, %v517
        %v521 = vstv %s514
        %vm522 = vcmp.lt.s32.totalorder %v509, %v521
        %vm523 = vcmp.lt.s32.totalorder %v510, %v521
        %vm524 = vcmp.lt.s32.totalorder %v511, %v521
        %vm525 = vmand %vm518, %vm522
        %vm526 = vmand %vm519, %vm523
        %vm527 = vmand %vm520, %vm524
        %v528 = vstv %s515
        %vm529 = vcmp.ge.s32.totalorder %v509, %v528
        %vm530 = vcmp.ge.s32.totalorder %v510, %v528
        %vm531 = vcmp.ge.s32.totalorder %v511, %v528
        %v532 = vstv %s516
        %vm533 = vcmp.lt.s32.totalorder %v509, %v532
        %vm534 = vcmp.lt.s32.totalorder %v510, %v532
        %vm535 = vcmp.lt.s32.totalorder %v511, %v532
        %vm536 = vmand %vm529, %vm533
        %vm537 = vmand %vm530, %vm534
        %vm538 = vmand %vm531, %vm535
        %vm539 = vmor %vm525, %vm536
        %vm540 = vmor %vm526, %vm537
        %vm541 = vmor %vm527, %vm538
        %v542 = vsel %vm539, 1, 0
        %v543 = vsel %vm540, 1, 0
        %v544 = vsel %vm541, 1, 0
        %vm545 = vcmp.eq.s32.totalorder %v542, 1
        %vm546 = vcmp.eq.s32.totalorder %v543, 1
        %vm547 = vcmp.eq.s32.totalorder %v544, 1
        %v548 = vsel %vm545, 0.0, %v505
        %v549 = vsel %vm546, 0.0, %v506
        %v550 = vsel %vm547, 0.0, %v507
        %v551 = vcvt.s32.f32 %v509
        %v552 = vcvt.s32.f32 %v510
        %v553 = vadd.f32 %v551, 0.5
        %v554 = vadd.f32 %v552, 0.5
        %v555 = vmul.f32 %v553, 0.0625
        %v556 = vmul.f32 %v554, 0.0625
        %v557 = vfloor.f32 %v555
        %v558 = vfloor.f32 %v556
        %v559 = vmul.f32 %v557, 16.0
        %v560 = vmul.f32 %v558, 16.0
        %v561 = vsub.f32 %v551, %v559
        %v562 = vsub.f32 %v552, %v560
        %vm563 = vcmp.gt.f32.partialorder %v561, 0.5
        %vm564 = vcmp.gt.f32.partialorder %v562, 0.5
        %v565 = vsel %vm563, 1, 0
        %v566 = vsel %vm564, 1, 0
        %v567 = vcvt.s32.f32 %v565
        %v568 = vcvt.s32.f32 %v566
        %vm569 = vcmp.lt.f32.partialorder %v561, 14.5
        %vm570 = vcmp.lt.f32.partialorder %v562, 14.5
        %v571 = vsel %vm569, 1, 0
        %v572 = vsel %vm570, 1, 0
        %v573 = vcvt.s32.f32 %v571
        %v574 = vcvt.s32.f32 %v572
        %577 = vrot.lane.b32.xlu0 %v567, 15
        %v578 = vpop.permute.xlu0 %577
        %579 = vrot.lane.b32.xlu0 %v568, 15
        %v580 = vpop.permute.xlu0 %579
        %vm581 = vcmask 121856
        %v582 = vsel %vm581, %v578, %v580
        %v586 = vmul.f32 %v548, %v578
        %v587 = vmul.f32 %v549, %v582
        %v588 = vmul.f32 %v550, %v580
        %v589 = vld [vmem:[#allocation5] sm:$0xf]
        %s590 = scalar_lea.vmem [#allocation5], 4
        %v591 = vld [vmem:[%s590] sm:$0xf]
        %595 = vrot.lane.b32.xlu0 %v548, 112
        %v596 = vpop.permute.xlu0 %595
        %597 = vrot.lane.b32.xlu0 %v549, 112
        %v598 = vpop.permute.xlu0 %597
        %599 = vrot.lane.b32.xlu0 %v550, 112
        %v600 = vpop.permute.xlu0 %599
        %vm601 = vcmask 916480
        %v602 = vsel %vm601, %v596, %v598
        %v603 = vsel %vm601, %v598, %v600
        %vm604 = vcmask 31744
        %v606 = vsel %vm604, %v591, 0
        %vm608 = vcmask 1043456
        %v609 = vsel %vm608, %v602, 0
        %v611 = vsel %vm608, %v603, 0
        %613 = vmatpush.msra.mxu0 0.0
        %614 = vmatpush.msra.mxu0 0.0
        %615 = vmatpush.msra.mxu0 0.0
        %616 = vmatpush.msra.mxu0 0.0
        %617 = vmatpush.msra.mxu0 0.0
        %618 = vmatpush.msra.mxu0 0.0
        %619 = vmatpush.msra.mxu0 0.0
        %620 = vmatpush.msra.mxu0 0.0
        %621 = vmatpush.msra.mxu0 0.0
        %622 = vmatpush.msra.mxu0 0.0
        %623 = vmatpush.msra.mxu0 0.0
        %624 = vmatpush.msra.mxu0 0.0
        %625 = vmatpush.msra.mxu0 0.0
        %626 = vmatpush.msra.mxu0 0.0
        %627 = vmatpush.msra.mxu0 0.0
        %628 = vmatpush.msra.mxu0 %v609
        %629 = vmatmul.f32.gmra.mxu0 %v606
        %v630 = vpop.f32.mrf.mxu0
        %v631 = vadd.f32 0.0, %v630
        %632 = vdwg.mxu0
        %633 = vmatpush.msra.mxu0 0.0
        %634 = vmatpush.msra.mxu0 0.0
        %635 = vmatpush.msra.mxu0 0.0
        %636 = vmatpush.msra.mxu0 0.0
        %637 = vmatpush.msra.mxu0 0.0
        %638 = vmatpush.msra.mxu0 0.0
        %639 = vmatpush.msra.mxu0 0.0
        %640 = vmatpush.msra.mxu0 0.0
        %641 = vmatpush.msra.mxu0 0.0
        %642 = vmatpush.msra.mxu0 0.0
        %643 = vmatpush.msra.mxu0 0.0
        %644 = vmatpush.msra.mxu0 0.0
        %645 = vmatpush.msra.mxu0 0.0
        %646 = vmatpush.msra.mxu0 0.0
        %647 = vmatpush.msra.mxu0 0.0
        %648 = vmatpush.msra.mxu0 %v611
        %649 = vmatmul.f32.gmra.mxu0 %v606
        %v650 = vpop.f32.mrf.mxu0
        %v651 = vadd.f32 0.0, %v650
        %652 = vdwg.mxu0
        %656 = vrot.lane.b32.xlu0 %v586, 113
        %v657 = vpop.permute.xlu0 %656
        %658 = vrot.lane.b32.xlu0 %v587, 113
        %v659 = vpop.permute.xlu0 %658
        %660 = vrot.lane.b32.xlu0 %v588, 113
        %v661 = vpop.permute.xlu0 %660
        %vm662 = vcmask 924672
        %v663 = vsel %vm662, %v657, %v659
        %v664 = vsel %vm662, %v659, %v661
        %v666 = vsel %vm604, %v589, 0
        %v668 = vsel %vm608, %v663, 0
        %v670 = vsel %vm608, %v664, 0
        %672 = vmatpush.msra.mxu0 0.0
        %673 = vmatpush.msra.mxu0 0.0
        %674 = vmatpush.msra.mxu0 0.0
        %675 = vmatpush.msra.mxu0 0.0
        %676 = vmatpush.msra.mxu0 0.0
        %677 = vmatpush.msra.mxu0 0.0
        %678 = vmatpush.msra.mxu0 0.0
        %679 = vmatpush.msra.mxu0 0.0
        %680 = vmatpush.msra.mxu0 0.0
        %681 = vmatpush.msra.mxu0 0.0
        %682 = vmatpush.msra.mxu0 0.0
        %683 = vmatpush.msra.mxu0 0.0
        %684 = vmatpush.msra.mxu0 0.0
        %685 = vmatpush.msra.mxu0 0.0
        %686 = vmatpush.msra.mxu0 0.0
        %687 = vmatpush.msra.mxu0 %v668
        %688 = vmatmul.f32.gmra.mxu0 %v666
        %v689 = vpop.f32.mrf.mxu0
        %v690 = vadd.f32 %v631, %v689
        %691 = vdwg.mxu0
        %692 = vmatpush.msra.mxu0 0.0
        %693 = vmatpush.msra.mxu0 0.0
        %694 = vmatpush.msra.mxu0 0.0
        %695 = vmatpush.msra.mxu0 0.0
        %696 = vmatpush.msra.mxu0 0.0
        %697 = vmatpush.msra.mxu0 0.0
        %698 = vmatpush.msra.mxu0 0.0
        %699 = vmatpush.msra.mxu0 0.0
        %700 = vmatpush.msra.mxu0 0.0
        %701 = vmatpush.msra.mxu0 0.0
        %702 = vmatpush.msra.mxu0 0.0
        %703 = vmatpush.msra.mxu0 0.0
        %704 = vmatpush.msra.mxu0 0.0
        %705 = vmatpush.msra.mxu0 0.0
        %706 = vmatpush.msra.mxu0 0.0
        %707 = vmatpush.msra.mxu0 %v670
        %708 = vmatmul.f32.gmra.mxu0 %v666
        %v709 = vpop.f32.mrf.mxu0
        %v710 = vadd.f32 %v651, %v709
        %711 = vdwg.mxu0
        %714 = vrot.lane.b32.xlu0 %v573, 17
        %v715 = vpop.permute.xlu0 %714
        %716 = vrot.lane.b32.xlu0 %v574, 17
        %v717 = vpop.permute.xlu0 %716
        %vm718 = vcmask 138240
        %v719 = vsel %vm718, %v715, %v717
        %v723 = vmul.f32 %v548, %v715
        %v724 = vmul.f32 %v549, %v719
        %v725 = vmul.f32 %v550, %v717
        %s726 = scalar_lea.vmem [#allocation5], 8
        %v727 = vld [vmem:[%s726] sm:$0xf]
        %731 = vrot.lane.b32.xlu0 %v723, 111
        %v732 = vpop.permute.xlu0 %731
        %733 = vrot.lane.b32.xlu0 %v724, 111
        %v734 = vpop.permute.xlu0 %733
        %735 = vrot.lane.b32.xlu0 %v725, 111
        %v736 = vpop.permute.xlu0 %735
        %vm737 = vcmask 908288
        %v738 = vsel %vm737, %v732, %v734
        %v739 = vsel %vm737, %v734, %v736
        %v741 = vsel %vm604, %v727, 0
        %v743 = vsel %vm608, %v738, 0
        %v745 = vsel %vm608, %v739, 0
        %747 = vmatpush.msra.mxu0 0.0
        %748 = vmatpush.msra.mxu0 0.0
        %749 = vmatpush.msra.mxu0 0.0
        %750 = vmatpush.msra.mxu0 0.0
        %751 = vmatpush.msra.mxu0 0.0
        %752 = vmatpush.msra.mxu0 0.0
        %753 = vmatpush.msra.mxu0 0.0
        %754 = vmatpush.msra.mxu0 0.0
        %755 = vmatpush.msra.mxu0 0.0
        %756 = vmatpush.msra.mxu0 0.0
        %757 = vmatpush.msra.mxu0 0.0
        %758 = vmatpush.msra.mxu0 0.0
        %759 = vmatpush.msra.mxu0 0.0
        %760 = vmatpush.msra.mxu0 0.0
        %761 = vmatpush.msra.mxu0 0.0
        %762 = vmatpush.msra.mxu0 %v743
        %763 = vmatmul.f32.gmra.mxu0 %v741
        %v764 = vpop.f32.mrf.mxu0
        %v765 = vadd.f32 0.0, %v764
        %766 = vdwg.mxu0
        %767 = vmatpush.msra.mxu0 0.0
        %768 = vmatpush.msra.mxu0 0.0
        %769 = vmatpush.msra.mxu0 0.0
        %770 = vmatpush.msra.mxu0 0.0
        %771 = vmatpush.msra.mxu0 0.0
        %772 = vmatpush.msra.mxu0 0.0
        %773 = vmatpush.msra.mxu0 0.0
        %774 = vmatpush.msra.mxu0 0.0
        %775 = vmatpush.msra.mxu0 0.0
        %776 = vmatpush.msra.mxu0 0.0
        %777 = vmatpush.msra.mxu0 0.0
        %778 = vmatpush.msra.mxu0 0.0
        %779 = vmatpush.msra.mxu0 0.0
        %780 = vmatpush.msra.mxu0 0.0
        %781 = vmatpush.msra.mxu0 0.0
        %782 = vmatpush.msra.mxu0 %v745
        %783 = vmatmul.f32.gmra.mxu0 %v741
        %v784 = vpop.f32.mrf.mxu0
        %v785 = vadd.f32 0.0, %v784
        %786 = vdwg.mxu0
        %v787 = vadd.f32 %v690, %v765
        %v788 = vadd.f32 %v710, %v785
        %789 = vrot.lane.b32.xlu0 %v567, 31
        %v790 = vpop.permute.xlu0 %789
        %791 = vrot.lane.b32.xlu0 %v568, 31
        %v792 = vpop.permute.xlu0 %791
        %vm793 = vcmask 252928
        %v794 = vsel %vm793, %v790, %v792
        %v798 = vmul.f32 %v548, %v790
        %v799 = vmul.f32 %v549, %v794
        %v800 = vmul.f32 %v550, %v792
        %s801 = scalar_lea.vmem [#allocation5], 12
        %v802 = vld [vmem:[%s801] sm:$0xf]
        %806 = vrot.lane.b32.xlu0 %v798, 97
        %v807 = vpop.permute.xlu0 %806
        %808 = vrot.lane.b32.xlu0 %v799, 97
        %v809 = vpop.permute.xlu0 %808
        %810 = vrot.lane.b32.xlu0 %v800, 97
        %v811 = vpop.permute.xlu0 %810
        %vm812 = vcmask 793600
        %v813 = vsel %vm812, %v807, %v809
        %v814 = vsel %vm812, %v809, %v811
        %v816 = vsel %vm604, %v802, 0
        %v818 = vsel %vm608, %v813, 0
        %v820 = vsel %vm608, %v814, 0
        %822 = vmatpush.msra.mxu0 0.0
        %823 = vmatpush.msra.mxu0 0.0
        %824 = vmatpush.msra.mxu0 0.0
        %825 = vmatpush.msra.mxu0 0.0
        %826 = vmatpush.msra.mxu0 0.0
        %827 = vmatpush.msra.mxu0 0.0
        %828 = vmatpush.msra.mxu0 0.0
        %829 = vmatpush.msra.mxu0 0.0
        %830 = vmatpush.msra.mxu0 0.0
        %831 = vmatpush.msra.mxu0 0.0
        %832 = vmatpush.msra.mxu0 0.0
        %833 = vmatpush.msra.mxu0 0.0
        %834 = vmatpush.msra.mxu0 0.0
        %835 = vmatpush.msra.mxu0 0.0
        %836 = vmatpush.msra.mxu0 0.0
        %837 = vmatpush.msra.mxu0 %v818
        %838 = vmatmul.f32.gmra.mxu0 %v816
        %v839 = vpop.f32.mrf.mxu0
        %v840 = vadd.f32 0.0, %v839
        %841 = vdwg.mxu0
        %842 = vmatpush.msra.mxu0 0.0
        %843 = vmatpush.msra.mxu0 0.0
        %844 = vmatpush.msra.mxu0 0.0
        %845 = vmatpush.msra.mxu0 0.0
        %846 = vmatpush.msra.mxu0 0.0
        %847 = vmatpush.msra.mxu0 0.0
        %848 = vmatpush.msra.mxu0 0.0
        %849 = vmatpush.msra.mxu0 0.0
        %850 = vmatpush.msra.mxu0 0.0
        %851 = vmatpush.msra.mxu0 0.0
        %852 = vmatpush.msra.mxu0 0.0
        %853 = vmatpush.msra.mxu0 0.0
        %854 = vmatpush.msra.mxu0 0.0
        %855 = vmatpush.msra.mxu0 0.0
        %856 = vmatpush.msra.mxu0 0.0
        %857 = vmatpush.msra.mxu0 %v820
        %858 = vmatmul.f32.gmra.mxu0 %v816
        %v859 = vpop.f32.mrf.mxu0
        %v860 = vadd.f32 0.0, %v859
        %861 = vdwg.mxu0
        %v862 = vadd.f32 %v787, %v840
        %v863 = vadd.f32 %v788, %v860
        %s864 = scalar_lea.vmem [#allocation5], 16
        %v865 = vld [vmem:[%s864] sm:$0xf]
        %866 = vrot.lane.b32.xlu0 %v548, 96
        %v867 = vpop.permute.xlu0 %866
        %868 = vrot.lane.b32.xlu0 %v549, 96
        %v869 = vpop.permute.xlu0 %868
        %870 = vrot.lane.b32.xlu0 %v550, 96
        %v871 = vpop.permute.xlu0 %870
        %vm872 = vcmask 785408
        %v873 = vsel %vm872, %v867, %v869
        %v874 = vsel %vm872, %v869, %v871
        %v876 = vsel %vm604, %v865, 0
        %v878 = vsel %vm608, %v873, 0
        %v880 = vsel %vm608, %v874, 0
        %882 = vmatpush.msra.mxu0 0.0
        %883 = vmatpush.msra.mxu0 0.0
        %884 = vmatpush.msra.mxu0 0.0
        %885 = vmatpush.msra.mxu0 0.0
        %886 = vmatpush.msra.mxu0 0.0
        %887 = vmatpush.msra.mxu0 0.0
        %888 = vmatpush.msra.mxu0 0.0
        %889 = vmatpush.msra.mxu0 0.0
        %890 = vmatpush.msra.mxu0 0.0
        %891 = vmatpush.msra.mxu0 0.0
        %892 = vmatpush.msra.mxu0 0.0
        %893 = vmatpush.msra.mxu0 0.0
        %894 = vmatpush.msra.mxu0 0.0
        %895 = vmatpush.msra.mxu0 0.0
        %896 = vmatpush.msra.mxu0 0.0
        %897 = vmatpush.msra.mxu0 %v878
        %898 = vmatmul.f32.gmra.mxu0 %v876
        %v899 = vpop.f32.mrf.mxu0
        %v900 = vadd.f32 0.0, %v899
        %901 = vdwg.mxu0
        %902 = vmatpush.msra.mxu0 0.0
        %903 = vmatpush.msra.mxu0 0.0
        %904 = vmatpush.msra.mxu0 0.0
        %905 = vmatpush.msra.mxu0 0.0
        %906 = vmatpush.msra.mxu0 0.0
        %907 = vmatpush.msra.mxu0 0.0
        %908 = vmatpush.msra.mxu0 0.0
        %909 = vmatpush.msra.mxu0 0.0
        %910 = vmatpush.msra.mxu0 0.0
        %911 = vmatpush.msra.mxu0 0.0
        %912 = vmatpush.msra.mxu0 0.0
        %913 = vmatpush.msra.mxu0 0.0
        %914 = vmatpush.msra.mxu0 0.0
        %915 = vmatpush.msra.mxu0 0.0
        %916 = vmatpush.msra.mxu0 0.0
        %917 = vmatpush.msra.mxu0 %v880
        %918 = vmatmul.f32.gmra.mxu0 %v876
        %v919 = vpop.f32.mrf.mxu0
        %v920 = vadd.f32 0.0, %v919
        %921 = vdwg.mxu0
        %v922 = vadd.f32 %v862, %v900
        %v923 = vadd.f32 %v863, %v920
        %924 = vrot.lane.b32.xlu0 %v573, 33
        %v925 = vpop.permute.xlu0 %924
        %926 = vrot.lane.b32.xlu0 %v574, 33
        %v927 = vpop.permute.xlu0 %926
        %vm928 = vcmask 269312
        %v929 = vsel %vm928, %v925, %v927
        %v933 = vmul.f32 %v548, %v925
        %v934 = vmul.f32 %v549, %v929
        %v935 = vmul.f32 %v550, %v927
        %s936 = scalar_lea.vmem [#allocation5], 20
        %v937 = vld [vmem:[%s936] sm:$0xf]
        %941 = vrot.lane.b32.xlu0 %v933, 95
        %v942 = vpop.permute.xlu0 %941
        %943 = vrot.lane.b32.xlu0 %v934, 95
        %v944 = vpop.permute.xlu0 %943
        %945 = vrot.lane.b32.xlu0 %v935, 95
        %v946 = vpop.permute.xlu0 %945
        %vm947 = vcmask 777216
        %v948 = vsel %vm947, %v942, %v944
        %v949 = vsel %vm947, %v944, %v946
        %v951 = vsel %vm604, %v937, 0
        %v953 = vsel %vm608, %v948, 0
        %v955 = vsel %vm608, %v949, 0
        %957 = vmatpush.msra.mxu0 0.0
        %958 = vmatpush.msra.mxu0 0.0
        %959 = vmatpush.msra.mxu0 0.0
        %960 = vmatpush.msra.mxu0 0.0
        %961 = vmatpush.msra.mxu0 0.0
        %962 = vmatpush.msra.mxu0 0.0
        %963 = vmatpush.msra.mxu0 0.0
        %964 = vmatpush.msra.mxu0 0.0
        %965 = vmatpush.msra.mxu0 0.0
        %966 = vmatpush.msra.mxu0 0.0
        %967 = vmatpush.msra.mxu0 0.0
        %968 = vmatpush.msra.mxu0 0.0
        %969 = vmatpush.msra.mxu0 0.0
        %970 = vmatpush.msra.mxu0 0.0
        %971 = vmatpush.msra.mxu0 0.0
        %972 = vmatpush.msra.mxu0 %v953
        %973 = vmatmul.f32.gmra.mxu0 %v951
        %v974 = vpop.f32.mrf.mxu0
        %v975 = vadd.f32 0.0, %v974
        %976 = vdwg.mxu0
        %977 = vmatpush.msra.mxu0 0.0
        %978 = vmatpush.msra.mxu0 0.0
        %979 = vmatpush.msra.mxu0 0.0
        %980 = vmatpush.msra.mxu0 0.0
        %981 = vmatpush.msra.mxu0 0.0
        %982 = vmatpush.msra.mxu0 0.0
        %983 = vmatpush.msra.mxu0 0.0
        %984 = vmatpush.msra.mxu0 0.0
        %985 = vmatpush.msra.mxu0 0.0
        %986 = vmatpush.msra.mxu0 0.0
        %987 = vmatpush.msra.mxu0 0.0
        %988 = vmatpush.msra.mxu0 0.0
        %989 = vmatpush.msra.mxu0 0.0
        %990 = vmatpush.msra.mxu0 0.0
        %991 = vmatpush.msra.mxu0 0.0
        %992 = vmatpush.msra.mxu0 %v955
        %993 = vmatmul.f32.gmra.mxu0 %v951
        %v994 = vpop.f32.mrf.mxu0
        %v995 = vadd.f32 0.0, %v994
        %996 = vdwg.mxu0
        %v997 = vadd.f32 %v922, %v975
        %v998 = vadd.f32 %v923, %v995
        %999 = vrot.lane.b32.xlu0 %v567, 47
        %v1000 = vpop.permute.xlu0 %999
        %1001 = vrot.lane.b32.xlu0 %v568, 47
        %v1002 = vpop.permute.xlu0 %1001
        %vm1003 = vcmask 384000
        %v1004 = vsel %vm1003, %v1000, %v1002
        %v1008 = vmul.f32 %v548, %v1000
        %v1009 = vmul.f32 %v549, %v1004
        %v1010 = vmul.f32 %v550, %v1002
        %s1011 = scalar_lea.vmem [#allocation5], 24
        %v1012 = vld [vmem:[%s1011] sm:$0xf]
        %1016 = vrot.lane.b32.xlu0 %v1008, 81
        %v1017 = vpop.permute.xlu0 %1016
        %1018 = vrot.lane.b32.xlu0 %v1009, 81
        %v1019 = vpop.permute.xlu0 %1018
        %1020 = vrot.lane.b32.xlu0 %v1010, 81
        %v1021 = vpop.permute.xlu0 %1020
        %vm1022 = vcmask 662528
        %v1023 = vsel %vm1022, %v1017, %v1019
        %v1024 = vsel %vm1022, %v1019, %v1021
        %v1026 = vsel %vm604, %v1012, 0
        %v1028 = vsel %vm608, %v1023, 0
        %v1030 = vsel %vm608, %v1024, 0
        %1032 = vmatpush.msra.mxu0 0.0
        %1033 = vmatpush.msra.mxu0 0.0
        %1034 = vmatpush.msra.mxu0 0.0
        %1035 = vmatpush.msra.mxu0 0.0
        %1036 = vmatpush.msra.mxu0 0.0
        %1037 = vmatpush.msra.mxu0 0.0
        %1038 = vmatpush.msra.mxu0 0.0
        %1039 = vmatpush.msra.mxu0 0.0
        %1040 = vmatpush.msra.mxu0 0.0
        %1041 = vmatpush.msra.mxu0 0.0
        %1042 = vmatpush.msra.mxu0 0.0
        %1043 = vmatpush.msra.mxu0 0.0
        %1044 = vmatpush.msra.mxu0 0.0
        %1045 = vmatpush.msra.mxu0 0.0
        %1046 = vmatpush.msra.mxu0 0.0
        %1047 = vmatpush.msra.mxu0 %v1028
        %1048 = vmatmul.f32.gmra.mxu0 %v1026
        %v1049 = vpop.f32.mrf.mxu0
        %v1050 = vadd.f32 0.0, %v1049
        %1051 = vdwg.mxu0
        %1052 = vmatpush.msra.mxu0 0.0
        %1053 = vmatpush.msra.mxu0 0.0
        %1054 = vmatpush.msra.mxu0 0.0
        %1055 = vmatpush.msra.mxu0 0.0
        %1056 = vmatpush.msra.mxu0 0.0
        %1057 = vmatpush.msra.mxu0 0.0
        %1058 = vmatpush.msra.mxu0 0.0
        %1059 = vmatpush.msra.mxu0 0.0
        %1060 = vmatpush.msra.mxu0 0.0
        %1061 = vmatpush.msra.mxu0 0.0
        %1062 = vmatpush.msra.mxu0 0.0
        %1063 = vmatpush.msra.mxu0 0.0
        %1064 = vmatpush.msra.mxu0 0.0
        %1065 = vmatpush.msra.mxu0 0.0
        %1066 = vmatpush.msra.mxu0 0.0
        %1067 = vmatpush.msra.mxu0 %v1030
        %1068 = vmatmul.f32.gmra.mxu0 %v1026
        %v1069 = vpop.f32.mrf.mxu0
        %v1070 = vadd.f32 0.0, %v1069
        %1071 = vdwg.mxu0
        %v1072 = vadd.f32 %v997, %v1050
        %v1073 = vadd.f32 %v998, %v1070
        %s1074 = scalar_lea.vmem [#allocation5], 28
        %v1075 = vld [vmem:[%s1074] sm:$0xf]
        %1076 = vrot.lane.b32.xlu0 %v548, 80
        %v1077 = vpop.permute.xlu0 %1076
        %1078 = vrot.lane.b32.xlu0 %v549, 80
        %v1079 = vpop.permute.xlu0 %1078
        %1080 = vrot.lane.b32.xlu0 %v550, 80
        %v1081 = vpop.permute.xlu0 %1080
        %vm1082 = vcmask 654336
        %v1083 = vsel %vm1082, %v1077, %v1079
        %v1084 = vsel %vm1082, %v1079, %v1081
        %v1086 = vsel %vm604, %v1075, 0
        %v1088 = vsel %vm608, %v1083, 0
        %v1090 = vsel %vm608, %v1084, 0
        %1092 = vmatpush.msra.mxu0 0.0
        %1093 = vmatpush.msra.mxu0 0.0
        %1094 = vmatpush.msra.mxu0 0.0
        %1095 = vmatpush.msra.mxu0 0.0
        %1096 = vmatpush.msra.mxu0 0.0
        %1097 = vmatpush.msra.mxu0 0.0
        %1098 = vmatpush.msra.mxu0 0.0
        %1099 = vmatpush.msra.mxu0 0.0
        %1100 = vmatpush.msra.mxu0 0.0
        %1101 = vmatpush.msra.mxu0 0.0
        %1102 = vmatpush.msra.mxu0 0.0
        %1103 = vmatpush.msra.mxu0 0.0
        %1104 = vmatpush.msra.mxu0 0.0
        %1105 = vmatpush.msra.mxu0 0.0
        %1106 = vmatpush.msra.mxu0 0.0
        %1107 = vmatpush.msra.mxu0 %v1088
        %1108 = vmatmul.f32.gmra.mxu0 %v1086
        %v1109 = vpop.f32.mrf.mxu0
        %v1110 = vadd.f32 0.0, %v1109
        %1111 = vdwg.mxu0
        %1112 = vmatpush.msra.mxu0 0.0
        %1113 = vmatpush.msra.mxu0 0.0
        %1114 = vmatpush.msra.mxu0 0.0
        %1115 = vmatpush.msra.mxu0 0.0
        %1116 = vmatpush.msra.mxu0 0.0
        %1117 = vmatpush.msra.mxu0 0.0
        %1118 = vmatpush.msra.mxu0 0.0
        %1119 = vmatpush.msra.mxu0 0.0
        %1120 = vmatpush.msra.mxu0 0.0
        %1121 = vmatpush.msra.mxu0 0.0
        %1122 = vmatpush.msra.mxu0 0.0
        %1123 = vmatpush.msra.mxu0 0.0
        %1124 = vmatpush.msra.mxu0 0.0
        %1125 = vmatpush.msra.mxu0 0.0
        %1126 = vmatpush.msra.mxu0 0.0
        %1127 = vmatpush.msra.mxu0 %v1090
        %1128 = vmatmul.f32.gmra.mxu0 %v1086
        %v1129 = vpop.f32.mrf.mxu0
        %v1130 = vadd.f32 0.0, %v1129
        %1131 = vdwg.mxu0
        %v1132 = vadd.f32 %v1072, %v1110
        %v1133 = vadd.f32 %v1073, %v1130
        %1134 = vrot.lane.b32.xlu0 %v573, 49
        %v1135 = vpop.permute.xlu0 %1134
        %1136 = vrot.lane.b32.xlu0 %v574, 49
        %v1137 = vpop.permute.xlu0 %1136
        %vm1138 = vcmask 400384
        %v1139 = vsel %vm1138, %v1135, %v1137
        %v1143 = vmul.f32 %v548, %v1135
        %v1144 = vmul.f32 %v549, %v1139
        %v1145 = vmul.f32 %v550, %v1137
        %s1146 = scalar_lea.vmem [#allocation5], 32
        %v1147 = vld [vmem:[%s1146] sm:$0xf]
        %1151 = vrot.lane.b32.xlu0 %v1143, 79
        %v1152 = vpop.permute.xlu0 %1151
        %1153 = vrot.lane.b32.xlu0 %v1144, 79
        %v1154 = vpop.permute.xlu0 %1153
        %1155 = vrot.lane.b32.xlu0 %v1145, 79
        %v1156 = vpop.permute.xlu0 %1155
        %vm1157 = vcmask 646144
        %v1158 = vsel %vm1157, %v1152, %v1154
        %v1159 = vsel %vm1157, %v1154, %v1156
        %v1161 = vsel %vm604, %v1147, 0
        %v1163 = vsel %vm608, %v1158, 0
        %v1165 = vsel %vm608, %v1159, 0
        %1167 = vmatpush.msra.mxu0 0.0
        %1168 = vmatpush.msra.mxu0 0.0
        %1169 = vmatpush.msra.mxu0 0.0
        %1170 = vmatpush.msra.mxu0 0.0
        %1171 = vmatpush.msra.mxu0 0.0
        %1172 = vmatpush.msra.mxu0 0.0
        %1173 = vmatpush.msra.mxu0 0.0
        %1174 = vmatpush.msra.mxu0 0.0
        %1175 = vmatpush.msra.mxu0 0.0
        %1176 = vmatpush.msra.mxu0 0.0
        %1177 = vmatpush.msra.mxu0 0.0
        %1178 = vmatpush.msra.mxu0 0.0
        %1179 = vmatpush.msra.mxu0 0.0
        %1180 = vmatpush.msra.mxu0 0.0
        %1181 = vmatpush.msra.mxu0 0.0
        %1182 = vmatpush.msra.mxu0 %v1163
        %1183 = vmatmul.f32.gmra.mxu0 %v1161
        %v1184 = vpop.f32.mrf.mxu0
        %v1185 = vadd.f32 0.0, %v1184
        %1186 = vdwg.mxu0
        %1187 = vmatpush.msra.mxu0 0.0
        %1188 = vmatpush.msra.mxu0 0.0
        %1189 = vmatpush.msra.mxu0 0.0
        %1190 = vmatpush.msra.mxu0 0.0
        %1191 = vmatpush.msra.mxu0 0.0
        %1192 = vmatpush.msra.mxu0 0.0
        %1193 = vmatpush.msra.mxu0 0.0
        %1194 = vmatpush.msra.mxu0 0.0
        %1195 = vmatpush.msra.mxu0 0.0
        %1196 = vmatpush.msra.mxu0 0.0
        %1197 = vmatpush.msra.mxu0 0.0
        %1198 = vmatpush.msra.mxu0 0.0
        %1199 = vmatpush.msra.mxu0 0.0
        %1200 = vmatpush.msra.mxu0 0.0
        %1201 = vmatpush.msra.mxu0 0.0
        %1202 = vmatpush.msra.mxu0 %v1165
        %1203 = vmatmul.f32.gmra.mxu0 %v1161
        %v1204 = vpop.f32.mrf.mxu0
        %v1205 = vadd.f32 0.0, %v1204
        %1206 = vdwg.mxu0
        %v1207 = vadd.f32 %v1132, %v1185
        %v1208 = vadd.f32 %v1133, %v1205
        %v1209 = vld [vmem:[%s5] sm:$0xf]
        %1211 = vset.pattern.permute.xlu0 0
        %1212 = vperm.xlu0 %1211, %v1209
        %v1213 = vpop.permute.xlu0 %1212
        %v1215 = vmul.f32 %v1207, %v1213
        %v1216 = vmul.f32 %v1208, %v1213
        %v1217 = vld [vmem:[%s6] sm:$0xf]
        %1219 = vset.pattern.permute.xlu0 0
        %1220 = vperm.xlu0 %1219, %v1217
        %v1221 = vpop.permute.xlu0 %1220
        %v1223 = vadd.f32 %v1215, %v1221
        %v1224 = vadd.f32 %v1216, %v1221
        %v1225 = vmax.f32 %v1223, 0.0
        %v1226 = vmax.f32 %v1224, 0.0
        %v1227 = vld [vmem:[%s7] sm:$0xff]
        %v1228 = vld [vmem:[%s7 + $0x8] sm:$0xff]
        %v1230 = vsel %vm604, %v1227, 0
        %v1233 = vsel %vm604, %v1228, 0
        %v1236 = vsel %vm608, %v1225, 0
        %v1239 = vsel %vm608, %v1226, 0
        %1241 = vmatpush.msra.mxu0 0.0
        %1242 = vmatpush.msra.mxu0 0.0
        %1243 = vmatpush.msra.mxu0 0.0
        %1244 = vmatpush.msra.mxu0 0.0
        %1245 = vmatpush.msra.mxu0 0.0
        %1246 = vmatpush.msra.mxu0 0.0
        %1247 = vmatpush.msra.mxu0 0.0
        %1248 = vmatpush.msra.mxu0 0.0
        %1249 = vmatpush.msra.mxu0 0.0
        %1250 = vmatpush.msra.mxu0 0.0
        %1251 = vmatpush.msra.mxu0 0.0
        %1252 = vmatpush.msra.mxu0 0.0
        %1253 = vmatpush.msra.mxu0 0.0
        %1254 = vmatpush.msra.mxu0 0.0
        %1255 = vmatpush.msra.mxu0 0.0
        %1256 = vmatpush.msra.mxu0 %v1236
        %1257 = vmatmul.f32.gmra.mxu0 %v1230
        %v1258 = vpop.f32.mrf.mxu0
        %v1259 = vadd.f32 0.0, %v1258
        %1260 = vmatmul.f32.gmra.mxu0 %v1233
        %v1261 = vpop.f32.mrf.mxu0
        %v1262 = vadd.f32 0.0, %v1261
        %1263 = vdwg.mxu0
        %1264 = vmatpush.msra.mxu0 0.0
        %1265 = vmatpush.msra.mxu0 0.0
        %1266 = vmatpush.msra.mxu0 0.0
        %1267 = vmatpush.msra.mxu0 0.0
        %1268 = vmatpush.msra.mxu0 0.0
        %1269 = vmatpush.msra.mxu0 0.0
        %1270 = vmatpush.msra.mxu0 0.0
        %1271 = vmatpush.msra.mxu0 0.0
        %1272 = vmatpush.msra.mxu0 0.0
        %1273 = vmatpush.msra.mxu0 0.0
        %1274 = vmatpush.msra.mxu0 0.0
        %1275 = vmatpush.msra.mxu0 0.0
        %1276 = vmatpush.msra.mxu0 0.0
        %1277 = vmatpush.msra.mxu0 0.0
        %1278 = vmatpush.msra.mxu0 0.0
        %1279 = vmatpush.msra.mxu0 %v1239
        %1280 = vmatmul.f32.gmra.mxu0 %v1230
        %v1281 = vpop.f32.mrf.mxu0
        %v1282 = vadd.f32 0.0, %v1281
        %1283 = vmatmul.f32.gmra.mxu0 %v1233
        %v1284 = vpop.f32.mrf.mxu0
        %v1285 = vadd.f32 0.0, %v1284
        %1286 = vdwg.mxu0
        %v1287 = vld [vmem:[%s8] sm:$0xff]
        %v1288 = vld [vmem:[%s8 + $0x8] sm:$0xff]
        %1290 = vset.pattern.permute.xlu0 0
        %1291 = vperm.xlu0 %1290, %v1287
        %v1292 = vpop.permute.xlu0 %1291
        %1295 = vset.pattern.permute.xlu0 0
        %1296 = vperm.xlu0 %1295, %v1288
        %v1297 = vpop.permute.xlu0 %1296
        %v1299 = vmul.f32 %v1259, %v1292
        %v1300 = vmul.f32 %v1282, %v1292
        %v1301 = vmul.f32 %v1262, %v1297
        %v1302 = vmul.f32 %v1285, %v1297
        %v1303 = vld [vmem:[%s9] sm:$0xff]
        %v1304 = vld [vmem:[%s9 + $0x8] sm:$0xff]
        %1306 = vset.pattern.permute.xlu0 0
        %1307 = vperm.xlu0 %1306, %v1303
        %v1308 = vpop.permute.xlu0 %1307
        %1311 = vset.pattern.permute.xlu0 0
        %1312 = vperm.xlu0 %1311, %v1304
        %v1313 = vpop.permute.xlu0 %1312
        %v1315 = vadd.f32 %v1299, %v1308
        %v1316 = vadd.f32 %v1300, %v1308
        %v1317 = vadd.f32 %v1301, %v1313
        %v1318 = vadd.f32 %v1302, %v1313
        %1325 = vrot.lane.b32.xlu0 %v416, 96
        %v1326 = vpop.permute.xlu0 %1325
        %1327 = vrot.lane.b32.xlu0 %v417, 96
        %v1328 = vpop.permute.xlu0 %1327
        %1329 = vrot.lane.b32.xlu0 %v418, 96
        %v1330 = vpop.permute.xlu0 %1329
        %1331 = vrot.lane.b32.xlu0 %v419, 96
        %v1332 = vpop.permute.xlu0 %1331
        %1333 = vrot.lane.b32.xlu0 %v420, 96
        %v1334 = vpop.permute.xlu0 %1333
        %1335 = vrot.lane.b32.xlu0 %v421, 96
        %v1336 = vpop.permute.xlu0 %1335
        %v1337 = vsel %vm872, %v1326, %v1328
        %v1338 = vsel %vm872, %v1328, %v1330
        %v1339 = vsel %vm872, %v1332, %v1334
        %v1340 = vsel %vm872, %v1334, %v1336
        %v1345 = vadd.f32 %v1315, %v1337
        %v1346 = vadd.f32 %v1316, %v1338
        %v1347 = vadd.f32 %v1317, %v1339
        %v1348 = vadd.f32 %v1318, %v1340
        %v1349 = vmax.f32 %v1345, 0.0
        %v1350 = vmax.f32 %v1346, 0.0
        %v1351 = vmax.f32 %v1347, 0.0
        %v1352 = vmax.f32 %v1348, 0.0
        %1353 = vst [vmem:[%s414] sm:$0xff] %v1349
        %1354 = vst [vmem:[%s414 + $0x8] sm:$0xff] %v1350
        %1355 = vst [vmem:[%s414 + $0x10] sm:$0xff] %v1351
        %1356 = vst [vmem:[%s414 + $0x18] sm:$0xff] %v1352
        %s1357 = sand.u32 %s267, 1
        %s1358 = scalar_lea.sflag [#allocation4], %s1357
        %s1359 = sand.u32 %s267, 1
        %s1360 = smul.addr %s1359, 32
        %s1361 = scalar_lea.vmem [#allocation7], %s1360
        // Predicated region
        $region69: #{tpu_custom_call.1} parent=59 // pred_check
          %p1362 = pneg %p277
        $region70: #{tpu_custom_call.1} parent=59 // pred_check_branch
          %1364 = sbr.rel (%p1362) target = $region72
        $region71: #{tpu_custom_call.1} parent=59 // pred_region
          %s1365 = smul.u32 2, %s33
          %1367 = vsyncadd %s1358, 0
          %s1368 = smul.addr %s32, 4
          %s1369 = sadd.s32 %s1365, %s1368
          %s1370 = smul.addr %s1369, 8
          %s1371 = scalar_lea.hbm %s10, %s1370
          %s1372 = sshll.u32 %s1361, 4
          %s1373 = int_to_ptr.vmem [resolvable:$true] %s1372
          %s1374 = sshll.u32 %s1371, 4
          %s1375 = int_to_ptr.hbm [resolvable:$true] %s1374
          %1380 = dma.vmem_to_hbm [thread:$0]  %s1373, 512, %s1375, %s1358, 256, 256, 16
        $region72: #{tpu_custom_call.1} parent=59 // pred_fallthru
          _
      $region60: #{tpu_custom_call.1} parent=5 // pred_fallthru
        _
      %p1381 = scmp.le.s32.totalorder 2, %s23
      // Predicated region
      $region73: #{tpu_custom_call.1} parent=5 // pred_check
        %p1382 = pneg %p1381
      $region74: #{tpu_custom_call.1} parent=5 // pred_check_branch
        %1384 = sbr.rel (%p1382) target = $region76
      $region75: #{tpu_custom_call.1} parent=5 // pred_region
        %s1385 = ssub.s32 %s23, 2
        // Predicated region
        $region77: #{tpu_custom_call.1} parent=75 // pred_check
          %p1386 = pneg %p283
        $region78: #{tpu_custom_call.1} parent=75 // pred_check_branch
          %1388 = sbr.rel (%p1386) target = $region80
        $region79: #{tpu_custom_call.1} parent=75 // pred_region
          %s1389 = sand.u32 %s268, 1
          %s1390 = scalar_lea.sflag [#allocation4], %s1389
          %s1391 = sand.u32 %s268, 1
          %s1392 = smul.addr %s1391, 32
          %s1393 = scalar_lea.vmem [#allocation7], %s1392
          %1395 = dma.done %s1390, 512
        $region80: #{tpu_custom_call.1} parent=75 // pred_fallthru
          _
      $region76: #{tpu_custom_call.1} parent=5 // pred_fallthru
        _
    $region6: #{tpu_custom_call.1} parent=1 // loop_footer
      %s27 = sadd.s32 1, %s23
    $region7: #{tpu_custom_call.1} parent=1 // loop_footer_branch
      %22 = sbr.rel target = $region3
    $region8: #{tpu_custom_call.1} parent=1 // loop_exit
      _
    %1396 = vsyncpa [#allocation3], 1
    %s1397 = scalar_lea.sflag [#allocation3], 1
    %1398 = vsyncpa %s1397, 1
    %1399 = vsyncpa [#allocation6], 1
    %1400 = vsyncpa [#allocation4], 1
    %s1401 = scalar_lea.sflag [#allocation4], 1
    %1402 = vsyncpa %s1401, 1

</llo_original>
